<compile_context>
chip_gen: v7x
topology: tpu7x:2x2x1
jax: 0.10.0
libtpu: 0.0.40
codegen_flags: <defaults>
</compile_context>

<pallas_src>
import functools

import jax
import jax.numpy as jnp
from jax.experimental import pallas as pl
from jax.experimental.pallas import tpu as pltpu

EPS = 1e-5  # both input_layernorm and post_attention_layernorm use eps=1e-5


# ----------------------------- small helpers ------------------------------- #

def _round_up(n, m):
    return ((n + m - 1) // m) * m


def _tpu_vmem_bytes():
    """Physical VMEM capacity (per core), with a conservative fallback."""
    try:
        info = pltpu.get_tpu_info()
        cap = getattr(info, "vmem_capacity_bytes", None)
        if cap:
            return int(cap)
    except Exception:
        pass
    return 64 * 1024 * 1024  # v7x-sized conservative default


def _default_tiles():
    """(tile_m, tile_i) defaults per generation (roofline-driven, see perf review)."""
    cap = _tpu_vmem_bytes()
    if cap >= 100 * 1024 * 1024:   # v5e / v6e (128 MiB VMEM)
        return 512, 1024
    return 256, 512                # v7x (64 MiB VMEM): tm=256 already ~80% of MXU peak


def _vmem_limit_bytes():
    return int(_tpu_vmem_bytes() * 0.8)


def _pick_row_tile(M, want):
    """Sublane-aligned row tile; prefers exact divisors of M (no per-call padding)
    and >=2 row tiles so the 'parallel' grid axis can use both v7x TensorCores."""
    want = max(8, (want // 8) * 8)
    if M <= want:
        if M >= 16 and M % 16 == 0:
            return M // 2
        return M if M % 8 == 0 else _round_up(M, 8)
    lo = max(8, want - 128)
    for t in range(want, lo - 1, -8):
        if M % t == 0:
            return t
    return want  # ragged last tile -> pad (rare, small relative cost at large M)


def _resident_spec(block_shape, index_map, *, single_buffer=True):
    """BlockSpec for operands with a constant index_map (fully VMEM-resident).
    Single-buffering them avoids paying 2x VMEM for the (D, D) mixer weight."""
    if single_buffer:
        try:
            return pl.BlockSpec(block_shape, index_map, pipeline_mode=pl.Buffered(1))
        except Exception:
            pass  # older jax without BlockSpec.pipeline_mode -> default buffering
    return pl.BlockSpec(block_shape, index_map)


def _rmsnorm(x, w):
    """LlamaRMSNorm: fp32 variance, rsqrt, cast back to input dtype, scale by weight."""
    xf = x.astype(jnp.float32)
    var = jnp.mean(xf * xf, axis=-1, keepdims=True)
    normed = xf * jax.lax.rsqrt(var + EPS)
    return w * normed.astype(x.dtype)


# -------------------------------- kernel ----------------------------------- #

def fused_block_kernel(
    x_ref, in_ln_ref, mix_w_ref, post_ln_ref, gu_ref, wd_ref,   # inputs
    o_ref,                                                       # output
    normed_ref, acc_ref,                                         # VMEM scratch
):
    j = pl.program_id(1)
    ti = wd_ref.shape[0]

    # ---- prologue: once per row tile (first I chunk) -------------------------
    @pl.when(j == 0)
    def _prologue():
        x = x_ref[...]
        h = _rmsnorm(x, in_ln_ref[...])
        # TODO(synk): DiscreteMamba2 mixer source is not provided in the module
        # listing; stand in with a deterministic dense d_model->d_model projection.
        mix = jnp.dot(h.astype(x.dtype), mix_w_ref[...],
                      preferred_element_type=jnp.float32)
        s = mix.astype(x.dtype) + x                    # residual after mixer add
        acc_ref[...] = s.astype(jnp.float32)           # accumulator starts at residual
        normed_ref[...] = _rmsnorm(s, post_ln_ref[...]).astype(normed_ref.dtype)

    # ---- MLP on the current I chunk, fused gate/up, fp32 accumulation --------
    h = normed_ref[...]
    gu = jnp.dot(h, gu_ref[...], preferred_element_type=jnp.float32)   # (tm, 2*ti)
    g = gu[:, :ti]
    u = gu[:, ti:]
    a = (g * jax.nn.sigmoid(g)) * u                    # silu(gate) * up
    acc_ref[...] += jnp.dot(a.astype(h.dtype), wd_ref[...],
                            preferred_element_type=jnp.float32)

    # ---- epilogue: single HBM write of the row tile ---------------------------
    @pl.when(j == pl.num_programs(1) - 1)
    def _epilogue():
        o_ref[...] = acc_ref[...].astype(o_ref.dtype)


# ----------------------- one-time weight preparation ------------------------ #

def prepare_block_params(params, *, tile_i=None):
    """Hoisted out of the per-call path: pad the intermediate dim once, fuse gate+up,
    and re-layout MLP weights chunk-major so each per-step weight fetch is one
    contiguous DMA burst.  Zero-padded gate/up columns and down rows contribute 0."""
    wg = jnp.asarray(params["gate_w_t"])   # (D, I)
    wu = jnp.asarray(params["up_w_t"])     # (D, I)
    wd = jnp.asarray(params["down_w_t"])   # (I, D)
    D, I = wg.shape

    if tile_i is None:
        _, tile_i = _default_tiles()

    if I <= 128:
        ti, Ip = I, I
    else:
        ti = max(128, min((tile_i // 128) * 128, _round_up(I, 128)))
        Ip = _round_up(I, ti)
    if Ip != I:
        wg = jnp.pad(wg, ((0, 0), (0, Ip - I)))
        wu = jnp.pad(wu, ((0, 0), (0, Ip - I)))
        wd = jnp.pad(wd, ((0, Ip - I), (0, 0)))
    nI = Ip // ti

    g_c = wg.reshape(D, nI, ti).transpose(1, 0, 2)     # (nI, D, ti)
    u_c = wu.reshape(D, nI, ti).transpose(1, 0, 2)     # (nI, D, ti)
    gate_up = jnp.concatenate([g_c, u_c], axis=-1)     # (nI, D, 2*ti), chunk-major
    down = wd.reshape(nI, ti, D)                       # (nI, ti, D), chunk-major

    return {
        "input_ln_w": jnp.asarray(params["input_ln_w"]).reshape(1, D),
        "post_ln_w": jnp.asarray(params["post_ln_w"]).reshape(1, D),
        "mixer_w": jnp.asarray(params["mixer_w"]),     # (D, D) placeholder mixer
        "gate_up_w": gate_up,
        "down_w": down,
    }


# -------------------------------- wrapper ----------------------------------- #

def block_forward(hidden_states, prepared, *, tile_m=None, single_buffer_resident=True):
    """hidden_states: (B, S, D) -> dict(hidden_states=(B, S, D)).
    `prepared` must come from prepare_block_params (weights already chunk-major)."""
    B, S, D = hidden_states.shape
    M = B * S
    dtype = hidden_states.dtype
    x = hidden_states.reshape(M, D)

    gu = prepared["gate_up_w"]          # (nI, D, 2*ti)
    dn = prepared["down_w"]             # (nI, ti, D)
    nI = gu.shape[0]
    ti = dn.shape[1]

    if tile_m is None:
        tile_m, _ = _default_tiles()
    tm = _pick_row_tile(M, tile_m)
    Mp = _round_up(M, tm)
    if Mp != M:
        # Only hit when no nearby divisor exists; padded rows are independent,
        # NaN-free through the RMSNorms, and sliced off below.
        x = jnp.pad(x, ((0, Mp - M), (0, 0)))

    grid = (Mp // tm, nI)
    resident = functools.partial(_resident_spec, single_buffer=single_buffer_resident)

    out = pl.pallas_call(
        fused_block_kernel,
        out_shape=jax.ShapeDtypeStruct((Mp, D), dtype),
        grid_spec=pltpu.PrefetchScalarGridSpec(
            num_scalar_prefetch=0,
            grid=grid,
            in_specs=[
                pl.BlockSpec((tm, D), lambda i, j: (i, 0)),        # activation rows (streamed)
                resident((1, D), lambda i, j: (0, 0)),             # input RMSNorm weight
                resident((D, D), lambda i, j: (0, 0)),             # mixer (placeholder) weight
                resident((1, D), lambda i, j: (0, 0)),             # post RMSNorm weight
                pl.BlockSpec((None, D, 2 * ti), lambda i, j: (j, 0, 0)),  # fused gate/up chunk
                pl.BlockSpec((None, ti, D), lambda i, j: (j, 0, 0)),      # down_proj chunk
            ],
            out_specs=pl.BlockSpec((tm, D), lambda i, j: (i, 0)),
            scratch_shapes=[
                pltpu.VMEM((tm, D), dtype),          # post-LN activations
                pltpu.VMEM((tm, D), jnp.float32),    # fp32 accumulator (holds residual too)
            ],
        ),
        compiler_params=pltpu.CompilerParams(
            dimension_semantics=("parallel", "arbitrary"),
            vmem_limit_bytes=_vmem_limit_bytes(),    # derived per TPU generation
        ),
    )(x, prepared["input_ln_w"], prepared["mixer_w"], prepared["post_ln_w"], gu, dn)

    return {"hidden_states": out[:M].reshape(B, S, D)}


# ------------------------- pure-JAX reference ------------------------------- #

def ref_forward(x3, params):
    def rms(x, w):
        xf = x.astype(jnp.float32)
        var = jnp.mean(xf * xf, axis=-1, keepdims=True)
        return w.reshape(-1) * (xf * jax.lax.rsqrt(var + EPS)).astype(x.dtype)

    residual = x3
    h = rms(x3, params["input_ln_w"])
    mix = h @ params["mixer_w"]
    h = mix.astype(residual.dtype) + residual
    residual = h
    h = rms(h, params["post_ln_w"])
    g = h @ params["gate_w_t"]
    u = h @ params["up_w_t"]
    h = (jax.nn.silu(g) * u) @ params["down_w_t"]
    return residual + h


# --------------------------------- main ------------------------------------- #

if __name__ == "__main__":
    B, S, D, I = 2, 8, 128, 256   # batch, seq, d_model, intermediate_size (lane-dense)
    key = jax.random.PRNGKey(0)
    k_x, k_mix, k_g, k_u, k_d = jax.random.split(key, 5)

    # fp32 for the numeric test; production should feed bf16 activations/weights
    # (fp32 accumulation inside the kernel is kept either way).
    x = jax.random.normal(k_x, (B, S, D), dtype=jnp.float32)
    params = {
        "input_ln_w": jnp.ones((D,), dtype=jnp.float32),
        "post_ln_w": jnp.ones((D,), dtype=jnp.float32),
        # Mixer placeholder weight (d_model, d_model) — see TODO(synk) in the kernel.
        "mixer_w": 0.05 * jax.random.normal(k_mix, (D, D), dtype=jnp.float32),
        # LlamaMLP weights, stored pre-transposed (in_features, out_features), bias=False.
        "gate_w_t": 0.05 * jax.random.normal(k_g, (D, I), dtype=jnp.float32),
        "up_w_t": 0.05 * jax.random.normal(k_u, (D, I), dtype=jnp.float32),
        "down_w_t": 0.05 * jax.random.normal(k_d, (I, D), dtype=jnp.float32),
    }
    ref = ref_forward(x, params)

    # One-time weight preparation (outside the jitted per-call path).
    w_tiled = prepare_block_params(params, tile_i=128)   # 2 I-chunks
    w_whole = prepare_block_params(params)               # single I-chunk at this size

    # Tiled path: 2 row tiles x 2 I-chunks — exercises the pl.when prologue/epilogue,
    # the fused gate/up chunk matmul and the fp32 reduction accumulator.
    single_buffer = True
    fwd_tiled = jax.jit(functools.partial(block_forward, tile_m=8))
    try:
        out = jax.block_until_ready(fwd_tiled(x, w_tiled)["hidden_states"])
    except Exception:
        # Fallback if this jax build rejects pipeline_mode=pl.Buffered(1) at lowering.
        single_buffer = False
        fwd_tiled = jax.jit(functools.partial(block_forward, tile_m=8,
                                              single_buffer_resident=False))
        out = jax.block_until_ready(fwd_tiled(x, w_tiled)["hidden_states"])

    assert out.shape == (B, S, D) and out.dtype == x.dtype
    assert jnp.allclose(out, ref, atol=1e-2, rtol=1e-2), "tiled kernel mismatch vs reference"

    # Default (generation-derived) tiling: single I chunk, 2 row tiles at this size.
    fwd_default = jax.jit(functools.partial(block_forward,
                                            single_buffer_resident=single_buffer))
    out2 = jax.block_until_ready(fwd_default(x, w_whole)["hidden_states"])
    assert jnp.allclose(out2, ref, atol=1e-2, rtol=1e-2), "default-tile kernel mismatch vs reference"

    print("KERNEL_OK")
</pallas_src>

<mosaic_0001>
module attributes {stable_mosaic.version = 11 : i64} {
  func.func @fused_block_kernel(%arg0: i32, %arg1: i32, %arg2: memref<8x128xf32, #tpu.memory_space<vmem>>, %arg3: memref<1x128xf32, #tpu.memory_space<vmem>>, %arg4: memref<128x128xf32, #tpu.memory_space<vmem>>, %arg5: memref<1x128xf32, #tpu.memory_space<vmem>>, %arg6: memref<1x128x256xf32, #tpu.memory_space<vmem>>, %arg7: memref<1x128x128xf32, #tpu.memory_space<vmem>>, %arg8: memref<8x128xf32, #tpu.memory_space<vmem>>, %arg9: memref<8x128xf32, #tpu.memory_space<vmem>>, %arg10: memref<8x128xf32, #tpu.memory_space<vmem>>) attributes {dimension_semantics = [#tpu.dimension_semantics<parallel>, #tpu.dimension_semantics<arbitrary>], iteration_bounds = array<i64: 2, 2>, scalar_prefetch = 0 : i64, scratch_operands = 2 : i64, tpu.core_type = #tpu.core_type<tc>, window_params = [{transform_indices = @transform_0, window_bounds = array<i64: 8, 128>}, {pipeline_mode = #tpu.pipeline_mode<synchronous>, transform_indices = @transform_1, window_bounds = array<i64: 1, 128>}, {pipeline_mode = #tpu.pipeline_mode<synchronous>, transform_indices = @transform_2, window_bounds = array<i64: 128, 128>}, {pipeline_mode = #tpu.pipeline_mode<synchronous>, transform_indices = @transform_3, window_bounds = array<i64: 1, 128>}, {transform_indices = @transform_4, window_bounds = array<i64: 1, 128, 256>}, {transform_indices = @transform_5, window_bounds = array<i64: 1, 128, 128>}, {transform_indices = @transform_6, window_bounds = array<i64: 8, 128>}]} {
    %c0_i32 = arith.constant 0 : i32
    %0 = arith.cmpi eq, %arg1, %c0_i32 : i32
    %1 = arith.extui %0 : i1 to i32
    %c0_i32_0 = arith.constant 0 : i32
    %2 = arith.cmpi ne, %1, %c0_i32_0 : i32
    scf.if %2 {
      %c0_15 = arith.constant 0 : index
      %c0_16 = arith.constant 0 : index
      %25 = vector.load %arg2[%c0_15, %c0_16] : memref<8x128xf32, #tpu.memory_space<vmem>>, vector<8x128xf32>
      %c0_17 = arith.constant 0 : index
      %c0_18 = arith.constant 0 : index
      %26 = vector.load %arg3[%c0_17, %c0_18] : memref<1x128xf32, #tpu.memory_space<vmem>>, vector<1x128xf32>
      %27 = arith.mulf %25, %25 : vector<8x128xf32>
      %cst_19 = arith.constant dense<0.000000e+00> : vector<8xf32>
      %28 = vector.multi_reduction <add>, %27, %cst_19 [1] : vector<8x128xf32> to vector<8xf32>
      %29 = vector.shape_cast %28 : vector<8xf32> to vector<8x1xf32>
      %cst_20 = arith.constant 1.280000e+02 : f32
      %30 = vector.broadcast %cst_20 : f32 to vector<8x1xf32>
      %31 = arith.divf %29, %30 : vector<8x1xf32>
      %cst_21 = arith.constant 9.99999974E-6 : f32
      %32 = vector.broadcast %cst_21 : f32 to vector<8x1xf32>
      %33 = arith.addf %31, %32 : vector<8x1xf32>
      %34 = math.rsqrt %33 : vector<8x1xf32>
      %35 = vector.broadcast %34 : vector<8x1xf32> to vector<8x128xf32>
      %36 = arith.mulf %25, %35 : vector<8x128xf32>
      %37 = vector.broadcast %26 : vector<1x128xf32> to vector<8x128xf32>
      %38 = arith.mulf %37, %36 : vector<8x128xf32>
      %c0_22 = arith.constant 0 : index
      %c0_23 = arith.constant 0 : index
      %39 = vector.load %arg4[%c0_22, %c0_23] : memref<128x128xf32, #tpu.memory_space<vmem>>, vector<128x128xf32>
      %cst_24 = arith.constant dense<0.000000e+00> : vector<8x128xf32>
      %40 = tpu.matmul %38, %39, %cst_24 {dimension_numbers = #tpu.dot_dimension_numbers<[1], [0], [0], [1], [0, 0, 1, 1], [], []>} : vector<8x128xf32>, vector<128x128xf32>, vector<8x128xf32> -> vector<8x128xf32>
      %41 = arith.addf %40, %25 : vector<8x128xf32>
      %c0_25 = arith.constant 0 : index
      %c0_26 = arith.constant 0 : index
      %42 = vector.load %arg10[%c0_25, %c0_26] : memref<8x128xf32, #tpu.memory_space<vmem>>, vector<8x128xf32>
      tpu.vector_store %arg10[%c0_25, %c0_26], %41 {strides = array<i32>} : memref<8x128xf32, #tpu.memory_space<vmem>>, vector<8x128xf32>,
      %c0_27 = arith.constant 0 : index
      %c0_28 = arith.constant 0 : index
      %43 = vector.load %arg5[%c0_27, %c0_28] : memref<1x128xf32, #tpu.memory_space<vmem>>, vector<1x128xf32>
      %44 = arith.mulf %41, %41 : vector<8x128xf32>
      %cst_29 = arith.constant dense<0.000000e+00> : vector<8xf32>
      %45 = vector.multi_reduction <add>, %44, %cst_29 [1] : vector<8x128xf32> to vector<8xf32>
      %46 = vector.shape_cast %45 : vector<8xf32> to vector<8x1xf32>
      %cst_30 = arith.constant 1.280000e+02 : f32
      %47 = vector.broadcast %cst_30 : f32 to vector<8x1xf32>
      %48 = arith.divf %46, %47 : vector<8x1xf32>
      %cst_31 = arith.constant 9.99999974E-6 : f32
      %49 = vector.broadcast %cst_31 : f32 to vector<8x1xf32>
      %50 = arith.addf %48, %49 : vector<8x1xf32>
      %51 = math.rsqrt %50 : vector<8x1xf32>
      %52 = vector.broadcast %51 : vector<8x1xf32> to vector<8x128xf32>
      %53 = arith.mulf %41, %52 : vector<8x128xf32>
      %54 = vector.broadcast %43 : vector<1x128xf32> to vector<8x128xf32>
      %55 = arith.mulf %54, %53 : vector<8x128xf32>
      %c0_32 = arith.constant 0 : index
      %c0_33 = arith.constant 0 : index
      %56 = vector.load %arg9[%c0_32, %c0_33] : memref<8x128xf32, #tpu.memory_space<vmem>>, vector<8x128xf32>
      tpu.vector_store %arg9[%c0_32, %c0_33], %55 {strides = array<i32>} : memref<8x128xf32, #tpu.memory_space<vmem>>, vector<8x128xf32>,
    } else {
    }
    %c0 = arith.constant 0 : index
    %c0_1 = arith.constant 0 : index
    %3 = vector.load %arg9[%c0, %c0_1] : memref<8x128xf32, #tpu.memory_space<vmem>>, vector<8x128xf32>
    %c0_2 = arith.constant 0 : index
    %c0_3 = arith.constant 0 : index
    %c0_4 = arith.constant 0 : index
    %4 = vector.load %arg6[%c0_2, %c0_3, %c0_4] : memref<1x128x256xf32, #tpu.memory_space<vmem>>, vector<1x128x256xf32>
    %5 = vector.shape_cast %4 : vector<1x128x256xf32> to vector<128x256xf32>
    %cst = arith.constant dense<0.000000e+00> : vector<8x256xf32>
    %6 = tpu.matmul %3, %5, %cst {dimension_numbers = #tpu.dot_dimension_numbers<[1], [0], [0], [1], [0, 0, 1, 1], [], []>} : vector<8x128xf32>, vector<128x256xf32>, vector<8x256xf32> -> vector<8x256xf32>
    %7 = vector.extract_strided_slice %6 {offsets = [0, 0], sizes = [8, 128], strides = [1, 1]} : vector<8x256xf32> to vector<8x128xf32>
    %8 = vector.extract_strided_slice %6 {offsets = [0, 128], sizes = [8, 128], strides = [1, 1]} : vector<8x256xf32> to vector<8x128xf32>
    %9 = arith.negf %7 : vector<8x128xf32>
    %10 = math.exp %9 : vector<8x128xf32>
    %cst_5 = arith.constant 1.000000e+00 : f32
    %11 = vector.broadcast %cst_5 : f32 to vector<8x128xf32>
    %12 = arith.addf %11, %10 : vector<8x128xf32>
    %13 = arith.divf %11, %12 : vector<8x128xf32>
    %14 = arith.mulf %7, %13 : vector<8x128xf32>
    %15 = arith.mulf %14, %8 : vector<8x128xf32>
    %c0_6 = arith.constant 0 : index
    %c0_7 = arith.constant 0 : index
    %16 = vector.load %arg10[%c0_6, %c0_7] : memref<8x128xf32, #tpu.memory_space<vmem>>, vector<8x128xf32>
    %c0_8 = arith.constant 0 : index
    %c0_9 = arith.constant 0 : index
    %c0_10 = arith.constant 0 : index
    %17 = vector.load %arg7[%c0_8, %c0_9, %c0_10] : memref<1x128x128xf32, #tpu.memory_space<vmem>>, vector<1x128x128xf32>
    %18 = vector.shape_cast %17 : vector<1x128x128xf32> to vector<128x128xf32>
    %cst_11 = arith.constant dense<0.000000e+00> : vector<8x128xf32>
    %19 = tpu.matmul %15, %18, %cst_11 {dimension_numbers = #tpu.dot_dimension_numbers<[1], [0], [0], [1], [0, 0, 1, 1], [], []>} : vector<8x128xf32>, vector<128x128xf32>, vector<8x128xf32> -> vector<8x128xf32>
    %20 = arith.addf %16, %19 : vector<8x128xf32>
    %c0_12 = arith.constant 0 : index
    %c0_13 = arith.constant 0 : index
    %21 = vector.load %arg10[%c0_12, %c0_13] : memref<8x128xf32, #tpu.memory_space<vmem>>, vector<8x128xf32>
    tpu.vector_store %arg10[%c0_12, %c0_13], %20 {strides = array<i32>} : memref<8x128xf32, #tpu.memory_space<vmem>>, vector<8x128xf32>,
    %c1_i32 = arith.constant 1 : i32
    %22 = arith.cmpi eq, %arg1, %c1_i32 : i32
    %23 = arith.extui %22 : i1 to i32
    %c0_i32_14 = arith.constant 0 : i32
    %24 = arith.cmpi ne, %23, %c0_i32_14 : i32
    scf.if %24 {
      %c0_15 = arith.constant 0 : index
      %c0_16 = arith.constant 0 : index
      %25 = vector.load %arg10[%c0_15, %c0_16] : memref<8x128xf32, #tpu.memory_space<vmem>>, vector<8x128xf32>
      %c0_17 = arith.constant 0 : index
      %c0_18 = arith.constant 0 : index
      %26 = vector.load %arg8[%c0_17, %c0_18] : memref<8x128xf32, #tpu.memory_space<vmem>>, vector<8x128xf32>
      tpu.vector_store %arg8[%c0_17, %c0_18], %25 {strides = array<i32>} : memref<8x128xf32, #tpu.memory_space<vmem>>, vector<8x128xf32>,
    } else {
    }
    return
  }
  func.func @transform_0(%arg0: i32, %arg1: i32) -> (i32, i32) {
    %c0_i32 = arith.constant 0 : i32
    %c0_i32_0 = arith.constant 0 : i32
    return %arg0, %c0_i32 : i32, i32
  }
  func.func @transform_1(%arg0: i32, %arg1: i32) -> (i32, i32) {
    %c0_i32 = arith.constant 0 : i32
    %c0_i32_0 = arith.constant 0 : i32
    %c0_i32_1 = arith.constant 0 : i32
    return %c0_i32, %c0_i32_0 : i32, i32
  }
  func.func @transform_2(%arg0: i32, %arg1: i32) -> (i32, i32) {
    %c0_i32 = arith.constant 0 : i32
    %c0_i32_0 = arith.constant 0 : i32
    %c0_i32_1 = arith.constant 0 : i32
    return %c0_i32, %c0_i32_0 : i32, i32
  }
  func.func @transform_3(%arg0: i32, %arg1: i32) -> (i32, i32) {
    %c0_i32 = arith.constant 0 : i32
    %c0_i32_0 = arith.constant 0 : i32
    %c0_i32_1 = arith.constant 0 : i32
    return %c0_i32, %c0_i32_0 : i32, i32
  }
  func.func @transform_4(%arg0: i32, %arg1: i32) -> (i32, i32, i32) {
    %c0_i32 = arith.constant 0 : i32
    %c0_i32_0 = arith.constant 0 : i32
    %c0_i32_1 = arith.constant 0 : i32
    return %arg1, %c0_i32, %c0_i32_0 : i32, i32, i32
  }
  func.func @transform_5(%arg0: i32, %arg1: i32) -> (i32, i32, i32) {
    %c0_i32 = arith.constant 0 : i32
    %c0_i32_0 = arith.constant 0 : i32
    %c0_i32_1 = arith.constant 0 : i32
    return %arg1, %c0_i32, %c0_i32_0 : i32, i32, i32
  }
  func.func @transform_6(%arg0: i32, %arg1: i32) -> (i32, i32) {
    %c0_i32 = arith.constant 0 : i32
    %c0_i32_0 = arith.constant 0 : i32
    return %arg0, %c0_i32 : i32, i32
  }
}

module attributes {stable_mosaic.version = 11 : i64} {
  func.func @fused_block_kernel(%arg0: i32, %arg1: i32, %arg2: memref<8x128xf32, #tpu.memory_space<vmem>>, %arg3: memref<1x128xf32, #tpu.memory_space<vmem>>, %arg4: memref<128x128xf32, #tpu.memory_space<vmem>>, %arg5: memref<1x128xf32, #tpu.memory_space<vmem>>, %arg6: memref<1x128x256xf32, #tpu.memory_space<vmem>>, %arg7: memref<1x128x128xf32, #tpu.memory_space<vmem>>, %arg8: memref<8x128xf32, #tpu.memory_space<vmem>>, %arg9: memref<8x128xf32, #tpu.memory_space<vmem>>, %arg10: memref<8x128xf32, #tpu.memory_space<vmem>>) attributes {dimension_semantics = [#tpu.dimension_semantics<parallel>, #tpu.dimension_semantics<arbitrary>], iteration_bounds = array<i64: 2, 2>, scalar_prefetch = 0 : i64, scratch_operands = 2 : i64, tpu.core_type = #tpu.core_type<tc>, window_params = [{transform_indices = @transform_0, window_bounds = array<i64: 8, 128>}, {pipeline_mode = #tpu.pipeline_mode<synchronous>, transform_indices = @transform_1, window_bounds = array<i64: 1, 128>}, {pipeline_mode = #tpu.pipeline_mode<synchronous>, transform_indices = @transform_2, window_bounds = array<i64: 128, 128>}, {pipeline_mode = #tpu.pipeline_mode<synchronous>, transform_indices = @transform_3, window_bounds = array<i64: 1, 128>}, {transform_indices = @transform_4, window_bounds = array<i64: 1, 128, 256>}, {transform_indices = @transform_5, window_bounds = array<i64: 1, 128, 128>}, {transform_indices = @transform_6, window_bounds = array<i64: 8, 128>}]} {
    %c0_i32 = arith.constant 0 : i32
    %0 = arith.cmpi eq, %arg1, %c0_i32 : i32
    %1 = arith.extui %0 : i1 to i32
    %c0_i32_0 = arith.constant 0 : i32
    %2 = arith.cmpi ne, %1, %c0_i32_0 : i32
    scf.if %2 {
      %c0_15 = arith.constant 0 : index
      %c0_16 = arith.constant 0 : index
      %25 = vector.load %arg2[%c0_15, %c0_16] : memref<8x128xf32, #tpu.memory_space<vmem>>, vector<8x128xf32>
      %c0_17 = arith.constant 0 : index
      %c0_18 = arith.constant 0 : index
      %26 = vector.load %arg3[%c0_17, %c0_18] : memref<1x128xf32, #tpu.memory_space<vmem>>, vector<1x128xf32>
      %27 = arith.mulf %25, %25 : vector<8x128xf32>
      %cst_19 = arith.constant dense<0.000000e+00> : vector<8xf32>
      %28 = vector.multi_reduction <add>, %27, %cst_19 [1] : vector<8x128xf32> to vector<8xf32>
      %29 = vector.shape_cast %28 : vector<8xf32> to vector<8x1xf32>
      %cst_20 = arith.constant 1.280000e+02 : f32
      %30 = vector.broadcast %cst_20 : f32 to vector<8x1xf32>
      %31 = arith.divf %29, %30 : vector<8x1xf32>
      %cst_21 = arith.constant 9.99999974E-6 : f32
      %32 = vector.broadcast %cst_21 : f32 to vector<8x1xf32>
      %33 = arith.addf %31, %32 : vector<8x1xf32>
      %34 = math.rsqrt %33 : vector<8x1xf32>
      %35 = vector.broadcast %34 : vector<8x1xf32> to vector<8x128xf32>
      %36 = arith.mulf %25, %35 : vector<8x128xf32>
      %37 = vector.broadcast %26 : vector<1x128xf32> to vector<8x128xf32>
      %38 = arith.mulf %37, %36 : vector<8x128xf32>
      %c0_22 = arith.constant 0 : index
      %c0_23 = arith.constant 0 : index
      %39 = vector.load %arg4[%c0_22, %c0_23] : memref<128x128xf32, #tpu.memory_space<vmem>>, vector<128x128xf32>
      %cst_24 = arith.constant dense<0.000000e+00> : vector<8x128xf32>
      %40 = tpu.matmul %38, %39, %cst_24 {dimension_numbers = #tpu.dot_dimension_numbers<[1], [0], [0], [1], [0, 0, 1, 1], [], []>} : vector<8x128xf32>, vector<128x128xf32>, vector<8x128xf32> -> vector<8x128xf32>
      %41 = arith.addf %40, %25 : vector<8x128xf32>
      %c0_25 = arith.constant 0 : index
      %c0_26 = arith.constant 0 : index
      %42 = vector.load %arg10[%c0_25, %c0_26] : memref<8x128xf32, #tpu.memory_space<vmem>>, vector<8x128xf32>
      tpu.vector_store %arg10[%c0_25, %c0_26], %41 {strides = array<i32>} : memref<8x128xf32, #tpu.memory_space<vmem>>, vector<8x128xf32>,
      %c0_27 = arith.constant 0 : index
      %c0_28 = arith.constant 0 : index
      %43 = vector.load %arg5[%c0_27, %c0_28] : memref<1x128xf32, #tpu.memory_space<vmem>>, vector<1x128xf32>
      %44 = arith.mulf %41, %41 : vector<8x128xf32>
      %cst_29 = arith.constant dense<0.000000e+00> : vector<8xf32>
      %45 = vector.multi_reduction <add>, %44, %cst_29 [1] : vector<8x128xf32> to vector<8xf32>
      %46 = vector.shape_cast %45 : vector<8xf32> to vector<8x1xf32>
      %cst_30 = arith.constant 1.280000e+02 : f32
      %47 = vector.broadcast %cst_30 : f32 to vector<8x1xf32>
      %48 = arith.divf %46, %47 : vector<8x1xf32>
      %cst_31 = arith.constant 9.99999974E-6 : f32
      %49 = vector.broadcast %cst_31 : f32 to vector<8x1xf32>
      %50 = arith.addf %48, %49 : vector<8x1xf32>
      %51 = math.rsqrt %50 : vector<8x1xf32>
      %52 = vector.broadcast %51 : vector<8x1xf32> to vector<8x128xf32>
      %53 = arith.mulf %41, %52 : vector<8x128xf32>
      %54 = vector.broadcast %43 : vector<1x128xf32> to vector<8x128xf32>
      %55 = arith.mulf %54, %53 : vector<8x128xf32>
      %c0_32 = arith.constant 0 : index
      %c0_33 = arith.constant 0 : index
      %56 = vector.load %arg9[%c0_32, %c0_33] : memref<8x128xf32, #tpu.memory_space<vmem>>, vector<8x128xf32>
      tpu.vector_store %arg9[%c0_32, %c0_33], %55 {strides = array<i32>} : memref<8x128xf32, #tpu.memory_space<vmem>>, vector<8x128xf32>,
    } else {
    }
    %c0 = arith.constant 0 : index
    %c0_1 = arith.constant 0 : index
    %3 = vector.load %arg9[%c0, %c0_1] : memref<8x128xf32, #tpu.memory_space<vmem>>, vector<8x128xf32>
    %c0_2 = arith.constant 0 : index
    %c0_3 = arith.constant 0 : index
    %c0_4 = arith.constant 0 : index
    %4 = vector.load %arg6[%c0_2, %c0_3, %c0_4] : memref<1x128x256xf32, #tpu.memory_space<vmem>>, vector<1x128x256xf32>
    %5 = vector.shape_cast %4 : vector<1x128x256xf32> to vector<128x256xf32>
    %cst = arith.constant dense<0.000000e+00> : vector<8x256xf32>
    %6 = tpu.matmul %3, %5, %cst {dimension_numbers = #tpu.dot_dimension_numbers<[1], [0], [0], [1], [0, 0, 1, 1], [], []>} : vector<8x128xf32>, vector<128x256xf32>, vector<8x256xf32> -> vector<8x256xf32>
    %7 = vector.extract_strided_slice %6 {offsets = [0, 0], sizes = [8, 128], strides = [1, 1]} : vector<8x256xf32> to vector<8x128xf32>
    %8 = vector.extract_strided_slice %6 {offsets = [0, 128], sizes = [8, 128], strides = [1, 1]} : vector<8x256xf32> to vector<8x128xf32>
    %9 = arith.negf %7 : vector<8x128xf32>
    %10 = math.exp %9 : vector<8x128xf32>
    %cst_5 = arith.constant 1.000000e+00 : f32
    %11 = vector.broadcast %cst_5 : f32 to vector<8x128xf32>
    %12 = arith.addf %11, %10 : vector<8x128xf32>
    %13 = arith.divf %11, %12 : vector<8x128xf32>
    %14 = arith.mulf %7, %13 : vector<8x128xf32>
    %15 = arith.mulf %14, %8 : vector<8x128xf32>
    %c0_6 = arith.constant 0 : index
    %c0_7 = arith.constant 0 : index
    %16 = vector.load %arg10[%c0_6, %c0_7] : memref<8x128xf32, #tpu.memory_space<vmem>>, vector<8x128xf32>
    %c0_8 = arith.constant 0 : index
    %c0_9 = arith.constant 0 : index
    %c0_10 = arith.constant 0 : index
    %17 = vector.load %arg7[%c0_8, %c0_9, %c0_10] : memref<1x128x128xf32, #tpu.memory_space<vmem>>, vector<1x128x128xf32>
    %18 = vector.shape_cast %17 : vector<1x128x128xf32> to vector<128x128xf32>
    %cst_11 = arith.constant dense<0.000000e+00> : vector<8x128xf32>
    %19 = tpu.matmul %15, %18, %cst_11 {dimension_numbers = #tpu.dot_dimension_numbers<[1], [0], [0], [1], [0, 0, 1, 1], [], []>} : vector<8x128xf32>, vector<128x128xf32>, vector<8x128xf32> -> vector<8x128xf32>
    %20 = arith.addf %16, %19 : vector<8x128xf32>
    %c0_12 = arith.constant 0 : index
    %c0_13 = arith.constant 0 : index
    %21 = vector.load %arg10[%c0_12, %c0_13] : memref<8x128xf32, #tpu.memory_space<vmem>>, vector<8x128xf32>
    tpu.vector_store %arg10[%c0_12, %c0_13], %20 {strides = array<i32>} : memref<8x128xf32, #tpu.memory_space<vmem>>, vector<8x128xf32>,
    %c1_i32 = arith.constant 1 : i32
    %22 = arith.cmpi eq, %arg1, %c1_i32 : i32
    %23 = arith.extui %22 : i1 to i32
    %c0_i32_14 = arith.constant 0 : i32
    %24 = arith.cmpi ne, %23, %c0_i32_14 : i32
    scf.if %24 {
      %c0_15 = arith.constant 0 : index
      %c0_16 = arith.constant 0 : index
      %25 = vector.load %arg10[%c0_15, %c0_16] : memref<8x128xf32, #tpu.memory_space<vmem>>, vector<8x128xf32>
      %c0_17 = arith.constant 0 : index
      %c0_18 = arith.constant 0 : index
      %26 = vector.load %arg8[%c0_17, %c0_18] : memref<8x128xf32, #tpu.memory_space<vmem>>, vector<8x128xf32>
      tpu.vector_store %arg8[%c0_17, %c0_18], %25 {strides = array<i32>} : memref<8x128xf32, #tpu.memory_space<vmem>>, vector<8x128xf32>,
    } else {
    }
    return
  }
  func.func @transform_0(%arg0: i32, %arg1: i32) -> (i32, i32) {
    %c0_i32 = arith.constant 0 : i32
    %c0_i32_0 = arith.constant 0 : i32
    return %arg0, %c0_i32 : i32, i32
  }
  func.func @transform_1(%arg0: i32, %arg1: i32) -> (i32, i32) {
    %c0_i32 = arith.constant 0 : i32
    %c0_i32_0 = arith.constant 0 : i32
    %c0_i32_1 = arith.constant 0 : i32
    return %c0_i32, %c0_i32_0 : i32, i32
  }
  func.func @transform_2(%arg0: i32, %arg1: i32) -> (i32, i32) {
    %c0_i32 = arith.constant 0 : i32
    %c0_i32_0 = arith.constant 0 : i32
    %c0_i32_1 = arith.constant 0 : i32
    return %c0_i32, %c0_i32_0 : i32, i32
  }
  func.func @transform_3(%arg0: i32, %arg1: i32) -> (i32, i32) {
    %c0_i32 = arith.constant 0 : i32
    %c0_i32_0 = arith.constant 0 : i32
    %c0_i32_1 = arith.constant 0 : i32
    return %c0_i32, %c0_i32_0 : i32, i32
  }
  func.func @transform_4(%arg0: i32, %arg1: i32) -> (i32, i32, i32) {
    %c0_i32 = arith.constant 0 : i32
    %c0_i32_0 = arith.constant 0 : i32
    %c0_i32_1 = arith.constant 0 : i32
    return %arg1, %c0_i32, %c0_i32_0 : i32, i32, i32
  }
  func.func @transform_5(%arg0: i32, %arg1: i32) -> (i32, i32, i32) {
    %c0_i32 = arith.constant 0 : i32
    %c0_i32_0 = arith.constant 0 : i32
    %c0_i32_1 = arith.constant 0 : i32
    return %arg1, %c0_i32, %c0_i32_0 : i32, i32, i32
  }
  func.func @transform_6(%arg0: i32, %arg1: i32) -> (i32, i32) {
    %c0_i32 = arith.constant 0 : i32
    %c0_i32_0 = arith.constant 0 : i32
    return %arg0, %c0_i32 : i32, i32
  }
}

</mosaic_0001>

<llo_original>
// kernel: block_forward.1
$region0: #{block_forward.1}
  #allocation0 [shape = 'u32[]', space=smem, size = 0x4, offset = 0x4, fixed_abs, tag = 'smem constant byte address 0x4 - core index']
  #allocation1 [shape = 'u32[144,128]{1,0:T(1,128)}', space=vmem, size = 0x12000, scoped, tag = 'internal scratch']
  #allocation2 [shape = 'f32[8,128]{1,0:T(8,128)}', space=vmem, size = 0x1000, scoped, tag = 'scratch operand']
  #allocation3 [shape = 'f32[8,128]{1,0:T(8,128)}', space=vmem, size = 0x1000, scoped, tag = 'scratch operand']
  %s0 = inlined_call_operand.hbm [shape: f32[16,128], index: 0, kind: input, shape index: {}]
  %s1 = inlined_call_operand.vmem [shape: f32[1,128], index: 1, kind: input, shape index: {}]
  %s2 = inlined_call_operand.hbm [shape: f32[128,128], index: 2, kind: input, shape index: {}]
  %s3 = inlined_call_operand.vmem [shape: f32[1,128], index: 3, kind: input, shape index: {}]
  %s4 = inlined_call_operand.hbm [shape: f32[2,128,256], index: 4, kind: input, shape index: {}]
  %s5 = inlined_call_operand.hbm [shape: f32[2,128,128], index: 5, kind: input, shape index: {}]
  %s6 = inlined_call_operand.hbm [shape: f32[16,128], index: 6, kind: output, shape index: {}]
  %s7 = sld [smem:[#allocation0]]
  $region81: #{block_forward.1} parent=0
    _
  %s9 = ssub.s32 1, %s7
  %s10 = scalar_select 0, %s9, %s7
  $region1: #{block_forward.1} parent=0
    #allocation4 [shape = 'u8[8192]{0}', space=vmem, size = 0x2000, scoped, tag = 'input window, operand 0']
    #allocation5 [shape = 's32[2]{0}', space=sflag, size = 0x8, scoped, tag = 'scoped memory for block_forward.1']
    #allocation6 [shape = 's32[2]{0}', space=sflag, size = 0x8, scoped, tag = 'scoped memory for block_forward.1']
    #allocation7 [shape = 'u8[65536]{0}', space=vmem, size = 0x10000, scoped, tag = 'input window, operand 2, single buffered']
    #allocation8 [shape = 's32[1]{0}', space=sflag, size = 0x4, scoped, tag = 'scoped memory for block_forward.1']
    #allocation9 [shape = 'u8[262144]{0}', space=vmem, size = 0x40000, scoped, tag = 'input window, operand 4']
    #allocation10 [shape = 'u8[131072]{0}', space=vmem, size = 0x20000, scoped, tag = 'input window, operand 5']
    #allocation11 [shape = 'u8[8192]{0}', space=vmem, size = 0x2000, scoped, tag = 'output window, operand 0']
    %11 = vsyncpa [#allocation5], 0
    %s12 = scalar_lea.sflag [#allocation5], 1
    %13 = vsyncpa %s12, 0
    %14 = vsyncpa [#allocation8], 0
    %15 = vsyncpa [#allocation6], 0
    %s16 = scalar_lea.sflag [#allocation6], 1
    %17 = vsyncpa %s16, 0
    loop: start=0, step=1, limit=6
    $region2: #{block_forward.1} parent=1 // loop_pre_header
      _
    $region3: #{block_forward.1} parent=1 // loop_header
      %s19 = sphi 0, %s23
      %p20 = scmp.ge.s32.totalorder %s19, 6
      %s26 = sphi 0, %s38
      %s27 = sphi 0, %s34
      %s28 = sphi 0, %s26
      %s29 = sphi 0, %s27
      %s30 = sphi 0, %s28
      %s31 = sphi 0, %s29
      %s41 = sphi 0, %s43
      %s44 = sphi 0, %s41
      %s45 = sphi 0, %s44
      %s61 = sphi 0, %s45
      %s65 = sphi 0, %s65
      %s67 = sphi 0, %s65
      %s68 = sphi 0, %s67
      %s82 = sphi 0, %s68
      %s86 = sphi 0, %s86
      %s88 = sphi 0, %s86
      %s89 = sphi 0, %s88
      %s103 = sphi 0, %s89
      %s107 = sphi 0, %s107
      %s109 = sphi 0, %s107
      %s110 = sphi 0, %s109
      %s124 = sphi 0, %s110
      %s130 = sphi 0, %s132
      %s133 = sphi 0, %s130
      %s134 = sphi 0, %s133
      %s150 = sphi 0, %s134
      %s156 = sphi 0, %s158
      %s159 = sphi 0, %s156
      %s160 = sphi 0, %s159
      %s176 = sphi 0, %s160
      %s182 = sphi 0, %s184
      %s185 = sphi 0, %s182
      %s186 = sphi 0, %s185
      %s202 = sphi 0, %s186
    $region4: #{block_forward.1} parent=1 // loop_header_branch
      %22 = sbr.rel (%p20) target = $region8
    $region5: #{block_forward.1} parent=1 // loop_body
      %s24 = ssub.s32 %s19, 1
      %s25 = ssub.s32 %s19, 2
      %s32 = sadd.s32 1, %s27
      %p33 = scmp.ge.s32.totalorder %s32, 2
      %s34 = scalar_select %p33, 0, %s32
      %s35 = sadd.s32 1, %s26
      %s36 = scalar_select %p33, %s35, %s26
      %p37 = scmp.ge.s32.totalorder %s36, 2
      %s38 = scalar_select %p37, 0, %s36
      %s39 = ssub.s32 %s26, %s38
      %p40 = scmp.eq.s32.totalorder %s39, 0
      %s42 = sadd.s32 %s41, 1
      %s43 = scalar_select %p40, %s41, %s42
      %p46 = pneg %p40
      %p47 = scmp.eq.s32.totalorder %s19, 3
      %p48 = por %p46, %p47
      %p49 = scmp.ne.s32.totalorder %s41, %s44
      %p50 = scmp.eq.s32.totalorder %s19, 0
      %p51 = por %p49, %p50
      %p52 = scmp.ne.s32.totalorder %s41, %s44
      %p53 = scmp.eq.s32.totalorder %s24, 3
      %p54 = por %p52, %p53
      %p55 = scmp.ne.s32.totalorder %s44, %s45
      %p56 = scmp.eq.s32.totalorder %s24, 0
      %p57 = por %p55, %p56
      %p58 = scmp.ne.s32.totalorder %s44, %s45
      %p59 = scmp.eq.s32.totalorder %s25, 3
      %p60 = por %p58, %p59
      %p62 = scmp.ne.s32.totalorder %s45, %s61
      %p63 = scmp.eq.s32.totalorder %s25, 0
      %p64 = por %p62, %p63
      %s66 = sadd.s32 %s65, 1
      %p69 = scmp.eq.s32.totalorder %s19, 3
      %p70 = scmp.ne.s32.totalorder %s65, %s67
      %p71 = scmp.eq.s32.totalorder %s19, 0
      %p72 = por %p70, %p71
      %p73 = scmp.ne.s32.totalorder %s65, %s67
      %p74 = scmp.eq.s32.totalorder %s24, 3
      %p75 = por %p73, %p74
      %p76 = scmp.ne.s32.totalorder %s67, %s68
      %p77 = scmp.eq.s32.totalorder %s24, 0
      %p78 = por %p76, %p77
      %p79 = scmp.ne.s32.totalorder %s67, %s68
      %p80 = scmp.eq.s32.totalorder %s25, 3
      %p81 = por %p79, %p80
      %p83 = scmp.ne.s32.totalorder %s68, %s82
      %p84 = scmp.eq.s32.totalorder %s25, 0
      %p85 = por %p83, %p84
      %s87 = sadd.s32 %s86, 1
      %p90 = scmp.eq.s32.totalorder %s19, 3
      %p91 = scmp.ne.s32.totalorder %s86, %s88
      %p92 = scmp.eq.s32.totalorder %s19, 0
      %p93 = por %p91, %p92
      %p94 = scmp.ne.s32.totalorder %s86, %s88
      %p95 = scmp.eq.s32.totalorder %s24, 3
      %p96 = por %p94, %p95
      %p97 = scmp.ne.s32.totalorder %s88, %s89
      %p98 = scmp.eq.s32.totalorder %s24, 0
      %p99 = por %p97, %p98
      %p100 = scmp.ne.s32.totalorder %s88, %s89
      %p101 = scmp.eq.s32.totalorder %s25, 3
      %p102 = por %p100, %p101
      %p104 = scmp.ne.s32.totalorder %s89, %s103
      %p105 = scmp.eq.s32.totalorder %s25, 0
      %p106 = por %p104, %p105
      %s108 = sadd.s32 %s107, 1
      %p111 = scmp.eq.s32.totalorder %s19, 3
      %p112 = scmp.ne.s32.totalorder %s107, %s109
      %p113 = scmp.eq.s32.totalorder %s19, 0
      %p114 = por %p112, %p113
      %p115 = scmp.ne.s32.totalorder %s107, %s109
      %p116 = scmp.eq.s32.totalorder %s24, 3
      %p117 = por %p115, %p116
      %p118 = scmp.ne.s32.totalorder %s109, %s110
      %p119 = scmp.eq.s32.totalorder %s24, 0
      %p120 = por %p118, %p119
      %p121 = scmp.ne.s32.totalorder %s109, %s110
      %p122 = scmp.eq.s32.totalorder %s25, 3
      %p123 = por %p121, %p122
      %p125 = scmp.ne.s32.totalorder %s110, %s124
      %p126 = scmp.eq.s32.totalorder %s25, 0
      %p127 = por %p125, %p126
      %s128 = ssub.s32 %s27, %s34
      %p129 = scmp.eq.s32.totalorder %s128, 0
      %s131 = sadd.s32 %s130, 1
      %s132 = scalar_select %p129, %s130, %s131
      %p135 = pneg %p129
      %p136 = scmp.eq.s32.totalorder %s19, 3
      %p137 = por %p135, %p136
      %p138 = scmp.ne.s32.totalorder %s130, %s133
      %p139 = scmp.eq.s32.totalorder %s19, 0
      %p140 = por %p138, %p139
      %p141 = scmp.ne.s32.totalorder %s130, %s133
      %p142 = scmp.eq.s32.totalorder %s24, 3
      %p143 = por %p141, %p142
      %p144 = scmp.ne.s32.totalorder %s133, %s134
      %p145 = scmp.eq.s32.totalorder %s24, 0
      %p146 = por %p144, %p145
      %p147 = scmp.ne.s32.totalorder %s133, %s134
      %p148 = scmp.eq.s32.totalorder %s25, 3
      %p149 = por %p147, %p148
      %p151 = scmp.ne.s32.totalorder %s134, %s150
      %p152 = scmp.eq.s32.totalorder %s25, 0
      %p153 = por %p151, %p152
      %s154 = ssub.s32 %s27, %s34
      %p155 = scmp.eq.s32.totalorder %s154, 0
      %s157 = sadd.s32 %s156, 1
      %s158 = scalar_select %p155, %s156, %s157
      %p161 = pneg %p155
      %p162 = scmp.eq.s32.totalorder %s19, 3
      %p163 = por %p161, %p162
      %p164 = scmp.ne.s32.totalorder %s156, %s159
      %p165 = scmp.eq.s32.totalorder %s19, 0
      %p166 = por %p164, %p165
      %p167 = scmp.ne.s32.totalorder %s156, %s159
      %p168 = scmp.eq.s32.totalorder %s24, 3
      %p169 = por %p167, %p168
      %p170 = scmp.ne.s32.totalorder %s159, %s160
      %p171 = scmp.eq.s32.totalorder %s24, 0
      %p172 = por %p170, %p171
      %p173 = scmp.ne.s32.totalorder %s159, %s160
      %p174 = scmp.eq.s32.totalorder %s25, 3
      %p175 = por %p173, %p174
      %p177 = scmp.ne.s32.totalorder %s160, %s176
      %p178 = scmp.eq.s32.totalorder %s25, 0
      %p179 = por %p177, %p178
      %s180 = ssub.s32 %s26, %s38
      %p181 = scmp.eq.s32.totalorder %s180, 0
      %s183 = sadd.s32 %s182, 1
      %s184 = scalar_select %p181, %s182, %s183
      %p187 = pneg %p181
      %p188 = scmp.eq.s32.totalorder %s19, 3
      %p189 = por %p187, %p188
      %p190 = scmp.ne.s32.totalorder %s182, %s185
      %p191 = scmp.eq.s32.totalorder %s19, 0
      %p192 = por %p190, %p191
      %p193 = scmp.ne.s32.totalorder %s182, %s185
      %p194 = scmp.eq.s32.totalorder %s24, 3
      %p195 = por %p193, %p194
      %p196 = scmp.ne.s32.totalorder %s185, %s186
      %p197 = scmp.eq.s32.totalorder %s24, 0
      %p198 = por %p196, %p197
      %p199 = scmp.ne.s32.totalorder %s185, %s186
      %p200 = scmp.eq.s32.totalorder %s25, 3
      %p201 = por %p199, %p200
      %p203 = scmp.ne.s32.totalorder %s186, %s202
      %p204 = scmp.eq.s32.totalorder %s25, 0
      %p205 = por %p203, %p204
      %p206 = scmp.le.s32.totalorder 1, %s19
      %p207 = scmp.lt.s32.totalorder %s19, 5
      %p208 = pnand %p206, %p207
      %p209 = pneg %p208
      // Predicated region
      $region9: #{block_forward.1} parent=5 // pred_check
        _
      $region10: #{block_forward.1} parent=5 // pred_check_branch
        %211 = sbr.rel (%p208) target = $region12
      $region11: #{block_forward.1} parent=5 // pred_region
        %s212 = ssub.s32 %s19, 1
        // Predicated region
        $region13: #{block_forward.1} parent=11 // pred_check
          %p213 = pneg %p78
        $region14: #{block_forward.1} parent=11 // pred_check_branch
          %215 = sbr.rel (%p213) target = $region16
        $region15: #{block_forward.1} parent=11 // pred_region
          _
        $region16: #{block_forward.1} parent=11 // pred_fallthru
          _
        // Predicated region
        $region17: #{block_forward.1} parent=11 // pred_check
          %p216 = pneg %p99
        $region18: #{block_forward.1} parent=11 // pred_check_branch
          %218 = sbr.rel (%p216) target = $region20
        $region19: #{block_forward.1} parent=11 // pred_region
          %s220 = ssub.s32 2048, 2048
          %221 = vsyncadd [#allocation8], %s220
          %s222 = sshll.u32 [#allocation7], 4
          %s223 = int_to_ptr.vmem [resolvable:$true] %s222
          %228 = dma.hbm_to_vmem [thread:$0]  %s2, 2048, %s223, [#allocation8], 128, 128, 8
        $region20: #{block_forward.1} parent=11 // pred_fallthru
          _
        // Predicated region
        $region21: #{block_forward.1} parent=11 // pred_check
          %p229 = pneg %p120
        $region22: #{block_forward.1} parent=11 // pred_check_branch
          %231 = sbr.rel (%p229) target = $region24
        $region23: #{block_forward.1} parent=11 // pred_region
          _
        $region24: #{block_forward.1} parent=11 // pred_fallthru
          _
      $region12: #{block_forward.1} parent=5 // pred_fallthru
        _
      %p232 = scmp.lt.s32.totalorder %s19, 4
      // Predicated region
      $region25: #{block_forward.1} parent=5 // pred_check
        %p233 = pneg %p232
      $region26: #{block_forward.1} parent=5 // pred_check_branch
        %235 = sbr.rel (%p233) target = $region28
      $region27: #{block_forward.1} parent=5 // pred_region
        // Predicated region
        $region29: #{block_forward.1} parent=27 // pred_check
          %p236 = pneg %p51
        $region30: #{block_forward.1} parent=27 // pred_check_branch
          %238 = sbr.rel (%p236) target = $region32
        $region31: #{block_forward.1} parent=27 // pred_region
          %s239 = sand.u32 %s19, 1
          %s240 = scalar_lea.sflag [#allocation5], %s239
          %s241 = sand.u32 %s41, 1
          %s242 = smul.addr %s241, 8
          %s243 = scalar_lea.vmem [#allocation4], %s242
          %s245 = ssub.s32 128, 128
          %246 = vsyncadd %s240, %s245
          %s247 = smul.addr %s26, 128
          %s248 = scalar_lea.hbm %s0, %s247
          %s250 = sshll.u32 %s243, 4
          %s251 = int_to_ptr.vmem [resolvable:$true] %s250
          %253 = dma.hbm_to_vmem [thread:$0]  %s248, 128, %s251, %s240
        $region32: #{block_forward.1} parent=27 // pred_fallthru
          _
        // Predicated region
        $region33: #{block_forward.1} parent=27 // pred_check
          %p254 = pneg %p140
        $region34: #{block_forward.1} parent=27 // pred_check_branch
          %256 = sbr.rel (%p254) target = $region36
        $region35: #{block_forward.1} parent=27 // pred_region
          %s257 = sand.u32 %s19, 1
          %s258 = scalar_lea.sflag [#allocation5], %s257
          %s259 = sand.u32 %s130, 1
          %s260 = smul.addr %s259, 256
          %s261 = scalar_lea.vmem [#allocation9], %s260
          %s263 = ssub.s32 4096, 4096
          %264 = vsyncadd %s258, %s263
          %s265 = smul.addr %s27, 32
          %s266 = smul.addr %s265, 128
          %s267 = scalar_lea.hbm %s4, %s266
          %s268 = sshll.u32 %s261, 4
          %s269 = int_to_ptr.vmem [resolvable:$true] %s268
          %274 = dma.hbm_to_vmem [thread:$0]  %s267, 4096, %s269, %s258, 256, 256, 16
        $region36: #{block_forward.1} parent=27 // pred_fallthru
          _
        // Predicated region
        $region37: #{block_forward.1} parent=27 // pred_check
          %p275 = pneg %p166
        $region38: #{block_forward.1} parent=27 // pred_check_branch
          %277 = sbr.rel (%p275) target = $region40
        $region39: #{block_forward.1} parent=27 // pred_region
          %s278 = sand.u32 %s19, 1
          %s279 = scalar_lea.sflag [#allocation5], %s278
          %s280 = sand.u32 %s156, 1
          %s281 = smul.addr %s280, 128
          %s282 = scalar_lea.vmem [#allocation10], %s281
          %s284 = ssub.s32 2048, 2048
          %285 = vsyncadd %s279, %s284
          %s286 = smul.addr %s27, 16
          %s287 = smul.addr %s286, 128
          %s288 = scalar_lea.hbm %s5, %s287
          %s289 = sshll.u32 %s282, 4
          %s290 = int_to_ptr.vmem [resolvable:$true] %s289
          %295 = dma.hbm_to_vmem [thread:$0]  %s288, 2048, %s290, %s279, 128, 128, 8
        $region40: #{block_forward.1} parent=27 // pred_fallthru
          _
      $region28: #{block_forward.1} parent=5 // pred_fallthru
        _
      %p296 = scmp.le.s32.totalorder 1, %s19
      %p297 = scmp.lt.s32.totalorder %s19, 5
      %p298 = pnand %p296, %p297
      %p299 = pneg %p298
      // Predicated region
      $region41: #{block_forward.1} parent=5 // pred_check
        _
      $region42: #{block_forward.1} parent=5 // pred_check_branch
        %301 = sbr.rel (%p298) target = $region44
      $region43: #{block_forward.1} parent=5 // pred_region
        %s302 = ssub.s32 %s19, 1
        %s303 = sand.u32 %s24, 1
        %s304 = scalar_lea.sflag [#allocation5], %s303
        %s305 = sand.u32 %s44, 1
        %s306 = smul.addr %s305, 8
        %s307 = scalar_lea.vmem [#allocation4], %s306
        // Predicated region
        $region45: #{block_forward.1} parent=43 // pred_check
          %p308 = pneg %p57
        $region46: #{block_forward.1} parent=43 // pred_check_branch
          %310 = sbr.rel (%p308) target = $region48
        $region47: #{block_forward.1} parent=43 // pred_region
          %311 = dma.done %s304, 128
        $region48: #{block_forward.1} parent=43 // pred_fallthru
          _
        // Predicated region
        $region49: #{block_forward.1} parent=43 // pred_check
          %p312 = pneg %p99
        $region50: #{block_forward.1} parent=43 // pred_check_branch
          %314 = sbr.rel (%p312) target = $region52
        $region51: #{block_forward.1} parent=43 // pred_region
          %315 = dma.done [#allocation8], 2048
        $region52: #{block_forward.1} parent=43 // pred_fallthru
          _
        %s316 = sand.u32 %s24, 1
        %s317 = scalar_lea.sflag [#allocation5], %s316
        %s318 = sand.u32 %s133, 1
        %s319 = smul.addr %s318, 256
        %s320 = scalar_lea.vmem [#allocation9], %s319
        // Predicated region
        $region53: #{block_forward.1} parent=43 // pred_check
          %p321 = pneg %p146
        $region54: #{block_forward.1} parent=43 // pred_check_branch
          %323 = sbr.rel (%p321) target = $region56
        $region55: #{block_forward.1} parent=43 // pred_region
          %324 = dma.done %s317, 4096
        $region56: #{block_forward.1} parent=43 // pred_fallthru
          _
        %s325 = sand.u32 %s24, 1
        %s326 = scalar_lea.sflag [#allocation5], %s325
        %s327 = sand.u32 %s159, 1
        %s328 = smul.addr %s327, 128
        %s329 = scalar_lea.vmem [#allocation10], %s328
        // Predicated region
        $region57: #{block_forward.1} parent=43 // pred_check
          %p330 = pneg %p172
        $region58: #{block_forward.1} parent=43 // pred_check_branch
          %332 = sbr.rel (%p330) target = $region60
        $region59: #{block_forward.1} parent=43 // pred_region
          %333 = dma.done %s326, 2048
        $region60: #{block_forward.1} parent=43 // pred_fallthru
          _
        %s334 = sand.u32 %s24, 1
        %s335 = scalar_lea.sflag [#allocation5], %s334
        %s336 = sand.u32 %s44, 1
        %s337 = smul.addr %s336, 8
        %s338 = scalar_lea.vmem [#allocation4], %s337
        %p339 = pneg %p57
        %p340 = pneg %p54
        %p341 = pneg %p78
        %p342 = pneg %p75
        %p343 = pneg %p99
        %p344 = pneg %p96
        %p345 = pneg %p120
        %p346 = pneg %p117
        %s347 = sand.u32 %s24, 1
        %s348 = scalar_lea.sflag [#allocation5], %s347
        %s349 = sand.u32 %s133, 1
        %s350 = smul.addr %s349, 256
        %s351 = scalar_lea.vmem [#allocation9], %s350
        %p352 = pneg %p146
        %p353 = pneg %p143
        %s354 = sand.u32 %s24, 1
        %s355 = scalar_lea.sflag [#allocation5], %s354
        %s356 = sand.u32 %s159, 1
        %s357 = smul.addr %s356, 128
        %s358 = scalar_lea.vmem [#allocation10], %s357
        %p359 = pneg %p172
        %p360 = pneg %p169
        %p361 = pneg %p198
        %p362 = pneg %p195
        %s363 = sand.u32 %s185, 1
        %s364 = scalar_lea.sflag [#allocation6], %s363
        %s365 = sand.u32 %s185, 1
        %s366 = smul.addr %s365, 8
        %s367 = scalar_lea.vmem [#allocation11], %s366
        %p368 = scmp.eq.s32.totalorder %s29, 0
        // Predicated region
        $region61: #{block_forward.1} parent=43 // pred_check
          %p369 = pneg %p368
        $region62: #{block_forward.1} parent=43 // pred_check_branch
          %371 = sbr.rel (%p369) target = $region64
        $region63: #{block_forward.1} parent=43 // pred_region
          %v372 = vld [vmem:[%s307] sm:$0xff]
          %v373 = vld [vmem:[%s1] sm:$0x1]
          %v374 = vmul.f32 %v372, %v372
          %375 = vadd.xlane.f32.xlu0 %v374
          %v376 = vpop.xlane.xlu0 %375
          %v377 = vrcp.pop 128.0
          %v378 = vmul.f32 %v376, %v377
          %v379 = vadd.f32 %v378, 1e-05
          %v380 = vrsqrt.pop %v379
          %v381 = vmul.f32 %v372, %v380
          %v383 = vlaneseq
          %v384 = vshrl.u32 %v383, 7
          %v385 = vsub.s32 0, %v384
          %v386 = vrot.slane %v373, %v385
          %v388 = vmul.f32 %v386, %v381
          %v389 = vld [vmem:[#allocation7] sm:$0xff]
          %v390 = vld [vmem:[#allocation7 + $0x8] sm:$0xff]
          %v391 = vld [vmem:[#allocation7 + $0x10] sm:$0xff]
          %v392 = vld [vmem:[#allocation7 + $0x18] sm:$0xff]
          %v393 = vld [vmem:[#allocation7 + $0x20] sm:$0xff]
          %v394 = vld [vmem:[#allocation7 + $0x28] sm:$0xff]
          %v395 = vld [vmem:[#allocation7 + $0x30] sm:$0xff]
          %v396 = vld [vmem:[#allocation7 + $0x38] sm:$0xff]
          %v397 = vld [vmem:[#allocation7 + $0x40] sm:$0xff]
          %v398 = vld [vmem:[#allocation7 + $0x48] sm:$0xff]
          %v399 = vld [vmem:[#allocation7 + $0x50] sm:$0xff]
          %v400 = vld [vmem:[#allocation7 + $0x58] sm:$0xff]
          %v401 = vld [vmem:[#allocation7 + $0x60] sm:$0xff]
          %v402 = vld [vmem:[#allocation7 + $0x68] sm:$0xff]
          %v403 = vld [vmem:[#allocation7 + $0x70] sm:$0xff]
          %v404 = vld [vmem:[#allocation7 + $0x78] sm:$0xff]
          %405 = vmatprep.subr.mxu0 0.0
          %406 = vmatpush1.msra.mxu0 %v389
          %407 = vmatprep.subr.mxu0 0.0
          %408 = vmatpush1.msra.mxu0 %v390
          %409 = vmatprep.subr.mxu0 0.0
          %410 = vmatpush1.msra.mxu0 %v391
          %411 = vmatprep.subr.mxu0 0.0
          %412 = vmatpush1.msra.mxu0 %v392
          %413 = vmatprep.subr.mxu0 0.0
          %414 = vmatpush1.msra.mxu0 %v393
          %415 = vmatprep.subr.mxu0 0.0
          %416 = vmatpush1.msra.mxu0 %v394
          %417 = vmatprep.subr.mxu0 0.0
          %418 = vmatpush1.msra.mxu0 %v395
          %419 = vmatprep.subr.mxu0 0.0
          %420 = vmatpush1.msra.mxu0 %v396
          %421 = vmatprep.subr.mxu0 0.0
          %422 = vmatpush1.msra.mxu0 %v397
          %423 = vmatprep.subr.mxu0 0.0
          %424 = vmatpush1.msra.mxu0 %v398
          %425 = vmatprep.subr.mxu0 0.0
          %426 = vmatpush1.msra.mxu0 %v399
          %427 = vmatprep.subr.mxu0 0.0
          %428 = vmatpush1.msra.mxu0 %v400
          %429 = vmatprep.subr.mxu0 0.0
          %430 = vmatpush1.msra.mxu0 %v401
          %431 = vmatprep.subr.mxu0 0.0
          %432 = vmatpush1.msra.mxu0 %v402
          %433 = vmatprep.subr.mxu0 0.0
          %434 = vmatpush1.msra.mxu0 %v403
          %435 = vmatprep.subr.mxu0 0.0
          %436 = vmatpush1.msra.mxu0 %v404
          %437 = vmatprep.subr.mxu0 0.0
          %438 = vmatpush1.msra.mxu0 0.0
          %439 = vmatprep.subr.mxu0 0.0
          %440 = vmatpush1.msra.mxu0 0.0
          %441 = vmatprep.subr.mxu0 0.0
          %442 = vmatpush1.msra.mxu0 0.0
          %443 = vmatprep.subr.mxu0 0.0
          %444 = vmatpush1.msra.mxu0 0.0
          %445 = vmatprep.subr.mxu0 0.0
          %446 = vmatpush1.msra.mxu0 0.0
          %447 = vmatprep.subr.mxu0 0.0
          %448 = vmatpush1.msra.mxu0 0.0
          %449 = vmatprep.subr.mxu0 0.0
          %450 = vmatpush1.msra.mxu0 0.0
          %451 = vmatprep.subr.mxu0 0.0
          %452 = vmatpush1.msra.mxu0 0.0
          %453 = vmatprep.subr.mxu0 0.0
          %454 = vmatpush1.msra.mxu0 0.0
          %455 = vmatprep.subr.mxu0 0.0
          %456 = vmatpush1.msra.mxu0 0.0
          %457 = vmatprep.subr.mxu0 0.0
          %458 = vmatpush1.msra.mxu0 0.0
          %459 = vmatprep.subr.mxu0 0.0
          %460 = vmatpush1.msra.mxu0 0.0
          %461 = vmatprep.subr.mxu0 0.0
          %462 = vmatpush1.msra.mxu0 0.0
          %463 = vmatprep.subr.mxu0 0.0
          %464 = vmatpush1.msra.mxu0 0.0
          %465 = vmatprep.subr.mxu0 0.0
          %466 = vmatpush1.msra.mxu0 0.0
          %467 = vmatprep.subr.mxu0 0.0
          %468 = vmatpush1.msra.mxu0 0.0
          %469 = vmatprep.mubr.f32.mxu0 0.0
          %470 = vmatmul.mubr.f32.gmra.mrb[0].mxu0 %v388
          %v471 = vpop.f32.mrb[0].mxu0
          %v472 = vadd.f32 %v372, %v471
          %v473 = vpop.f32.mrb[0].mxu0
          %474 = vdwg.mxu0
          %475 = vst [vmem:[#allocation3] sm:$0xff] %v472
          %v476 = vld [vmem:[%s3] sm:$0x1]
          %v477 = vmul.f32 %v472, %v472
          %478 = vadd.xlane.f32.xlu0 %v477
          %v479 = vpop.xlane.xlu0 %478
          %v480 = vmul.f32 %v479, %v377
          %v481 = vadd.f32 %v480, 1e-05
          %v482 = vrsqrt.pop %v481
          %v483 = vmul.f32 %v472, %v482
          %v485 = vlaneseq
          %v486 = vshrl.u32 %v485, 7
          %v487 = vsub.s32 0, %v486
          %v488 = vrot.slane %v476, %v487
          %v490 = vmul.f32 %v488, %v483
          %491 = vst [vmem:[#allocation2] sm:$0xff] %v490
        $region64: #{block_forward.1} parent=43 // pred_fallthru
          _
        %v492 = vld [vmem:[#allocation2] sm:$0xff]
        %v493 = vld [vmem:[%s320] sm:$0xff]
        %v494 = vld [vmem:[%s320 + $0x8] sm:$0xff]
        %v495 = vld [vmem:[%s320 + $0x10] sm:$0xff]
        %v496 = vld [vmem:[%s320 + $0x18] sm:$0xff]
        %v497 = vld [vmem:[%s320 + $0x20] sm:$0xff]
        %v498 = vld [vmem:[%s320 + $0x28] sm:$0xff]
        %v499 = vld [vmem:[%s320 + $0x30] sm:$0xff]
        %v500 = vld [vmem:[%s320 + $0x38] sm:$0xff]
        %v501 = vld [vmem:[%s320 + $0x40] sm:$0xff]
        %v502 = vld [vmem:[%s320 + $0x48] sm:$0xff]
        %v503 = vld [vmem:[%s320 + $0x50] sm:$0xff]
        %v504 = vld [vmem:[%s320 + $0x58] sm:$0xff]
        %v505 = vld [vmem:[%s320 + $0x60] sm:$0xff]
        %v506 = vld [vmem:[%s320 + $0x68] sm:$0xff]
        %v507 = vld [vmem:[%s320 + $0x70] sm:$0xff]
        %v508 = vld [vmem:[%s320 + $0x78] sm:$0xff]
        %v509 = vld [vmem:[%s320 + $0x80] sm:$0xff]
        %v510 = vld [vmem:[%s320 + $0x88] sm:$0xff]
        %v511 = vld [vmem:[%s320 + $0x90] sm:$0xff]
        %v512 = vld [vmem:[%s320 + $0x98] sm:$0xff]
        %v513 = vld [vmem:[%s320 + $0xa0] sm:$0xff]
        %v514 = vld [vmem:[%s320 + $0xa8] sm:$0xff]
        %v515 = vld [vmem:[%s320 + $0xb0] sm:$0xff]
        %v516 = vld [vmem:[%s320 + $0xb8] sm:$0xff]
        %v517 = vld [vmem:[%s320 + $0xc0] sm:$0xff]
        %v518 = vld [vmem:[%s320 + $0xc8] sm:$0xff]
        %v519 = vld [vmem:[%s320 + $0xd0] sm:$0xff]
        %v520 = vld [vmem:[%s320 + $0xd8] sm:$0xff]
        %v521 = vld [vmem:[%s320 + $0xe0] sm:$0xff]
        %v522 = vld [vmem:[%s320 + $0xe8] sm:$0xff]
        %v523 = vld [vmem:[%s320 + $0xf0] sm:$0xff]
        %v524 = vld [vmem:[%s320 + $0xf8] sm:$0xff]
        %525 = vmatprep.subr.mxu0 %v494
        %526 = vmatpush1.msra.mxu0 %v493
        %527 = vmatprep.subr.mxu0 %v496
        %528 = vmatpush1.msra.mxu0 %v495
        %529 = vmatprep.subr.mxu0 %v498
        %530 = vmatpush1.msra.mxu0 %v497
        %531 = vmatprep.subr.mxu0 %v500
        %532 = vmatpush1.msra.mxu0 %v499
        %533 = vmatprep.subr.mxu0 %v502
        %534 = vmatpush1.msra.mxu0 %v501
        %535 = vmatprep.subr.mxu0 %v504
        %536 = vmatpush1.msra.mxu0 %v503
        %537 = vmatprep.subr.mxu0 %v506
        %538 = vmatpush1.msra.mxu0 %v505
        %539 = vmatprep.subr.mxu0 %v508
        %540 = vmatpush1.msra.mxu0 %v507
        %541 = vmatprep.subr.mxu0 %v510
        %542 = vmatpush1.msra.mxu0 %v509
        %543 = vmatprep.subr.mxu0 %v512
        %544 = vmatpush1.msra.mxu0 %v511
        %545 = vmatprep.subr.mxu0 %v514
        %546 = vmatpush1.msra.mxu0 %v513
        %547 = vmatprep.subr.mxu0 %v516
        %548 = vmatpush1.msra.mxu0 %v515
        %549 = vmatprep.subr.mxu0 %v518
        %550 = vmatpush1.msra.mxu0 %v517
        %551 = vmatprep.subr.mxu0 %v520
        %552 = vmatpush1.msra.mxu0 %v519
        %553 = vmatprep.subr.mxu0 %v522
        %554 = vmatpush1.msra.mxu0 %v521
        %555 = vmatprep.subr.mxu0 %v524
        %556 = vmatpush1.msra.mxu0 %v523
        %557 = vmatprep.subr.mxu0 0.0
        %558 = vmatpush1.msra.mxu0 0.0
        %559 = vmatprep.subr.mxu0 0.0
        %560 = vmatpush1.msra.mxu0 0.0
        %561 = vmatprep.subr.mxu0 0.0
        %562 = vmatpush1.msra.mxu0 0.0
        %563 = vmatprep.subr.mxu0 0.0
        %564 = vmatpush1.msra.mxu0 0.0
        %565 = vmatprep.subr.mxu0 0.0
        %566 = vmatpush1.msra.mxu0 0.0
        %567 = vmatprep.subr.mxu0 0.0
        %568 = vmatpush1.msra.mxu0 0.0
        %569 = vmatprep.subr.mxu0 0.0
        %570 = vmatpush1.msra.mxu0 0.0
        %571 = vmatprep.subr.mxu0 0.0
        %572 = vmatpush1.msra.mxu0 0.0
        %573 = vmatprep.subr.mxu0 0.0
        %574 = vmatpush1.msra.mxu0 0.0
        %575 = vmatprep.subr.mxu0 0.0
        %576 = vmatpush1.msra.mxu0 0.0
        %577 = vmatprep.subr.mxu0 0.0
        %578 = vmatpush1.msra.mxu0 0.0
        %579 = vmatprep.subr.mxu0 0.0
        %580 = vmatpush1.msra.mxu0 0.0
        %581 = vmatprep.subr.mxu0 0.0
        %582 = vmatpush1.msra.mxu0 0.0
        %583 = vmatprep.subr.mxu0 0.0
        %584 = vmatpush1.msra.mxu0 0.0
        %585 = vmatprep.subr.mxu0 0.0
        %586 = vmatpush1.msra.mxu0 0.0
        %587 = vmatprep.subr.mxu0 0.0
        %588 = vmatpush1.msra.mxu0 0.0
        %589 = vmatprep.mubr.f32.mxu0 0.0
        %590 = vmatmul.mubr.f32.gmra.mrb[0].mxu0 %v492
        %v591 = vpop.f32.mrb[0].mxu0
        %v592 = vadd.f32 0.0, %v591
        %v593 = vpop.f32.mrb[0].mxu0
        %v594 = vadd.f32 0.0, %v593
        %595 = vdwg.mxu0
        %v596 = vxor.u32 %v592, 2147483648
        %v597 = vmul.f32 %v596, 1.442695
        %v598 = vpow.pop %v597
        %v599 = vadd.f32 %v598, 1.0
        %v600 = vrcp.pop %v599
        %v601 = vmul.f32 1.0, %v600
        %v602 = vmul.f32 %v592, %v601
        %v603 = vmul.f32 %v602, %v594
        %v604 = vld [vmem:[#allocation3] sm:$0xff]
        %v605 = vld [vmem:[%s329] sm:$0xff]
        %v606 = vld [vmem:[%s329 + $0x8] sm:$0xff]
        %v607 = vld [vmem:[%s329 + $0x10] sm:$0xff]
        %v608 = vld [vmem:[%s329 + $0x18] sm:$0xff]
        %v609 = vld [vmem:[%s329 + $0x20] sm:$0xff]
        %v610 = vld [vmem:[%s329 + $0x28] sm:$0xff]
        %v611 = vld [vmem:[%s329 + $0x30] sm:$0xff]
        %v612 = vld [vmem:[%s329 + $0x38] sm:$0xff]
        %v613 = vld [vmem:[%s329 + $0x40] sm:$0xff]
        %v614 = vld [vmem:[%s329 + $0x48] sm:$0xff]
        %v615 = vld [vmem:[%s329 + $0x50] sm:$0xff]
        %v616 = vld [vmem:[%s329 + $0x58] sm:$0xff]
        %v617 = vld [vmem:[%s329 + $0x60] sm:$0xff]
        %v618 = vld [vmem:[%s329 + $0x68] sm:$0xff]
        %v619 = vld [vmem:[%s329 + $0x70] sm:$0xff]
        %v620 = vld [vmem:[%s329 + $0x78] sm:$0xff]
        %621 = vmatprep.subr.mxu0 0.0
        %622 = vmatpush1.msra.mxu0 %v605
        %623 = vmatprep.subr.mxu0 0.0
        %624 = vmatpush1.msra.mxu0 %v606
        %625 = vmatprep.subr.mxu0 0.0
        %626 = vmatpush1.msra.mxu0 %v607
        %627 = vmatprep.subr.mxu0 0.0
        %628 = vmatpush1.msra.mxu0 %v608
        %629 = vmatprep.subr.mxu0 0.0
        %630 = vmatpush1.msra.mxu0 %v609
        %631 = vmatprep.subr.mxu0 0.0
        %632 = vmatpush1.msra.mxu0 %v610
        %633 = vmatprep.subr.mxu0 0.0
        %634 = vmatpush1.msra.mxu0 %v611
        %635 = vmatprep.subr.mxu0 0.0
        %636 = vmatpush1.msra.mxu0 %v612
        %637 = vmatprep.subr.mxu0 0.0
        %638 = vmatpush1.msra.mxu0 %v613
        %639 = vmatprep.subr.mxu0 0.0
        %640 = vmatpush1.msra.mxu0 %v614
        %641 = vmatprep.subr.mxu0 0.0
        %642 = vmatpush1.msra.mxu0 %v615
        %643 = vmatprep.subr.mxu0 0.0
        %644 = vmatpush1.msra.mxu0 %v616
        %645 = vmatprep.subr.mxu0 0.0
        %646 = vmatpush1.msra.mxu0 %v617
        %647 = vmatprep.subr.mxu0 0.0
        %648 = vmatpush1.msra.mxu0 %v618
        %649 = vmatprep.subr.mxu0 0.0
        %650 = vmatpush1.msra.mxu0 %v619
        %651 = vmatprep.subr.mxu0 0.0
        %652 = vmatpush1.msra.mxu0 %v620
        %653 = vmatprep.subr.mxu0 0.0
        %654 = vmatpush1.msra.mxu0 0.0
        %655 = vmatprep.subr.mxu0 0.0
        %656 = vmatpush1.msra.mxu0 0.0
        %657 = vmatprep.subr.mxu0 0.0
        %658 = vmatpush1.msra.mxu0 0.0
        %659 = vmatprep.subr.mxu0 0.0
        %660 = vmatpush1.msra.mxu0 0.0
        %661 = vmatprep.subr.mxu0 0.0
        %662 = vmatpush1.msra.mxu0 0.0
        %663 = vmatprep.subr.mxu0 0.0
        %664 = vmatpush1.msra.mxu0 0.0
        %665 = vmatprep.subr.mxu0 0.0
        %666 = vmatpush1.msra.mxu0 0.0
        %667 = vmatprep.subr.mxu0 0.0
        %668 = vmatpush1.msra.mxu0 0.0
        %669 = vmatprep.subr.mxu0 0.0
        %670 = vmatpush1.msra.mxu0 0.0
        %671 = vmatprep.subr.mxu0 0.0
        %672 = vmatpush1.msra.mxu0 0.0
        %673 = vmatprep.subr.mxu0 0.0
        %674 = vmatpush1.msra.mxu0 0.0
        %675 = vmatprep.subr.mxu0 0.0
        %676 = vmatpush1.msra.mxu0 0.0
        %677 = vmatprep.subr.mxu0 0.0
        %678 = vmatpush1.msra.mxu0 0.0
        %679 = vmatprep.subr.mxu0 0.0
        %680 = vmatpush1.msra.mxu0 0.0
        %681 = vmatprep.subr.mxu0 0.0
        %682 = vmatpush1.msra.mxu0 0.0
        %683 = vmatprep.subr.mxu0 0.0
        %684 = vmatpush1.msra.mxu0 0.0
        %685 = vmatprep.mubr.f32.mxu0 0.0
        %686 = vmatmul.mubr.f32.gmra.mrb[0].mxu0 %v603
        %v687 = vpop.f32.mrb[0].mxu0
        %v688 = vadd.f32 0.0, %v687
        %v689 = vpop.f32.mrb[0].mxu0
        %690 = vdwg.mxu0
        %v691 = vadd.f32 %v604, %v688
        %692 = vst [vmem:[#allocation3] sm:$0xff] %v691
        %p693 = scmp.eq.s32.totalorder %s29, 1
        // Predicated region
        $region65: #{block_forward.1} parent=43 // pred_check
          %p694 = pneg %p693
        $region66: #{block_forward.1} parent=43 // pred_check_branch
          %696 = sbr.rel (%p694) target = $region68
        $region67: #{block_forward.1} parent=43 // pred_region
          %v697 = vld [vmem:[#allocation3] sm:$0xff]
          %698 = vst [vmem:[%s367] sm:$0xff] %v697
        $region68: #{block_forward.1} parent=43 // pred_fallthru
          _
        %s699 = sand.u32 %s185, 1
        %s700 = scalar_lea.sflag [#allocation6], %s699
        %s701 = sand.u32 %s185, 1
        %s702 = smul.addr %s701, 8
        %s703 = scalar_lea.vmem [#allocation11], %s702
        // Predicated region
        $region69: #{block_forward.1} parent=43 // pred_check
          %p704 = pneg %p195
        $region70: #{block_forward.1} parent=43 // pred_check_branch
          %706 = sbr.rel (%p704) target = $region72
        $region71: #{block_forward.1} parent=43 // pred_region
          %s708 = ssub.s32 128, 128
          %709 = vsyncadd %s700, %s708
          %s710 = smul.addr %s28, 128
          %s711 = scalar_lea.hbm %s6, %s710
          %s713 = sshll.u32 %s703, 4
          %s714 = int_to_ptr.vmem [resolvable:$true] %s713
          %716 = dma.vmem_to_hbm [thread:$0]  %s714, 128, %s711, %s700
        $region72: #{block_forward.1} parent=43 // pred_fallthru
          _
      $region44: #{block_forward.1} parent=5 // pred_fallthru
        _
      %p717 = scmp.le.s32.totalorder 2, %s19
      // Predicated region
      $region73: #{block_forward.1} parent=5 // pred_check
        %p718 = pneg %p717
      $region74: #{block_forward.1} parent=5 // pred_check_branch
        %720 = sbr.rel (%p718) target = $region76
      $region75: #{block_forward.1} parent=5 // pred_region
        %s721 = ssub.s32 %s19, 2
        // Predicated region
        $region77: #{block_forward.1} parent=75 // pred_check
          %p722 = pneg %p201
        $region78: #{block_forward.1} parent=75 // pred_check_branch
          %724 = sbr.rel (%p722) target = $region80
        $region79: #{block_forward.1} parent=75 // pred_region
          %s725 = sand.u32 %s186, 1
          %s726 = scalar_lea.sflag [#allocation6], %s725
          %s727 = sand.u32 %s186, 1
          %s728 = smul.addr %s727, 8
          %s729 = scalar_lea.vmem [#allocation11], %s728
          %730 = dma.done %s726, 128
        $region80: #{block_forward.1} parent=75 // pred_fallthru
          _
      $region76: #{block_forward.1} parent=5 // pred_fallthru
        _
    $region6: #{block_forward.1} parent=1 // loop_footer
      %s23 = sadd.s32 1, %s19
    $region7: #{block_forward.1} parent=1 // loop_footer_branch
      %18 = sbr.rel target = $region3
    $region8: #{block_forward.1} parent=1 // loop_exit
      _
    %731 = vsyncpa [#allocation5], 1
    %s732 = scalar_lea.sflag [#allocation5], 1
    %733 = vsyncpa %s732, 1
    %734 = vsyncpa [#allocation8], 1
    %735 = vsyncpa [#allocation6], 1
    %s736 = scalar_lea.sflag [#allocation6], 1
    %737 = vsyncpa %s736, 1

// kernel: block_forward.1
$region0: #{block_forward.1}
  #allocation0 [shape = 'u32[]', space=smem, size = 0x4, offset = 0x4, fixed_abs, tag = 'smem constant byte address 0x4 - core index']
  #allocation1 [shape = 'u32[144,128]{1,0:T(1,128)}', space=vmem, size = 0x12000, scoped, tag = 'internal scratch']
  #allocation2 [shape = 'f32[8,128]{1,0:T(8,128)}', space=vmem, size = 0x1000, scoped, tag = 'scratch operand']
  #allocation3 [shape = 'f32[8,128]{1,0:T(8,128)}', space=vmem, size = 0x1000, scoped, tag = 'scratch operand']
  %s0 = inlined_call_operand.hbm [shape: f32[16,128], index: 0, kind: input, shape index: {}]
  %s1 = inlined_call_operand.vmem [shape: f32[1,128], index: 1, kind: input, shape index: {}]
  %s2 = inlined_call_operand.hbm [shape: f32[128,128], index: 2, kind: input, shape index: {}]
  %s3 = inlined_call_operand.vmem [shape: f32[1,128], index: 3, kind: input, shape index: {}]
  %s4 = inlined_call_operand.hbm [shape: f32[2,128,256], index: 4, kind: input, shape index: {}]
  %s5 = inlined_call_operand.hbm [shape: f32[2,128,128], index: 5, kind: input, shape index: {}]
  %s6 = inlined_call_operand.hbm [shape: f32[16,128], index: 6, kind: output, shape index: {}]
  %s7 = sld [smem:[#allocation0]]
  $region81: #{block_forward.1} parent=0
    _
  %s9 = ssub.s32 1, %s7
  %s10 = scalar_select 0, %s9, %s7
  $region1: #{block_forward.1} parent=0
    #allocation4 [shape = 'u8[8192]{0}', space=vmem, size = 0x2000, scoped, tag = 'input window, operand 0']
    #allocation5 [shape = 's32[2]{0}', space=sflag, size = 0x8, scoped, tag = 'scoped memory for block_forward.1']
    #allocation6 [shape = 's32[2]{0}', space=sflag, size = 0x8, scoped, tag = 'scoped memory for block_forward.1']
    #allocation7 [shape = 'u8[65536]{0}', space=vmem, size = 0x10000, scoped, tag = 'input window, operand 2, single buffered']
    #allocation8 [shape = 's32[1]{0}', space=sflag, size = 0x4, scoped, tag = 'scoped memory for block_forward.1']
    #allocation9 [shape = 'u8[262144]{0}', space=vmem, size = 0x40000, scoped, tag = 'input window, operand 4']
    #allocation10 [shape = 'u8[131072]{0}', space=vmem, size = 0x20000, scoped, tag = 'input window, operand 5']
    #allocation11 [shape = 'u8[8192]{0}', space=vmem, size = 0x2000, scoped, tag = 'output window, operand 0']
    %11 = vsyncpa [#allocation5], 0
    %s12 = scalar_lea.sflag [#allocation5], 1
    %13 = vsyncpa %s12, 0
    %14 = vsyncpa [#allocation8], 0
    %15 = vsyncpa [#allocation6], 0
    %s16 = scalar_lea.sflag [#allocation6], 1
    %17 = vsyncpa %s16, 0
    loop: start=0, step=1, limit=6
    $region2: #{block_forward.1} parent=1 // loop_pre_header
      _
    $region3: #{block_forward.1} parent=1 // loop_header
      %s19 = sphi 0, %s23
      %p20 = scmp.ge.s32.totalorder %s19, 6
      %s26 = sphi 0, %s38
      %s27 = sphi 0, %s34
      %s28 = sphi 0, %s26
      %s29 = sphi 0, %s27
      %s30 = sphi 0, %s28
      %s31 = sphi 0, %s29
      %s41 = sphi 0, %s43
      %s44 = sphi 0, %s41
      %s45 = sphi 0, %s44
      %s61 = sphi 0, %s45
      %s65 = sphi 0, %s65
      %s67 = sphi 0, %s65
      %s68 = sphi 0, %s67
      %s82 = sphi 0, %s68
      %s86 = sphi 0, %s86
      %s88 = sphi 0, %s86
      %s89 = sphi 0, %s88
      %s103 = sphi 0, %s89
      %s107 = sphi 0, %s107
      %s109 = sphi 0, %s107
      %s110 = sphi 0, %s109
      %s124 = sphi 0, %s110
      %s130 = sphi 0, %s132
      %s133 = sphi 0, %s130
      %s134 = sphi 0, %s133
      %s150 = sphi 0, %s134
      %s156 = sphi 0, %s158
      %s159 = sphi 0, %s156
      %s160 = sphi 0, %s159
      %s176 = sphi 0, %s160
      %s182 = sphi 0, %s184
      %s185 = sphi 0, %s182
      %s186 = sphi 0, %s185
      %s202 = sphi 0, %s186
    $region4: #{block_forward.1} parent=1 // loop_header_branch
      %22 = sbr.rel (%p20) target = $region8
    $region5: #{block_forward.1} parent=1 // loop_body
      %s24 = ssub.s32 %s19, 1
      %s25 = ssub.s32 %s19, 2
      %s32 = sadd.s32 1, %s27
      %p33 = scmp.ge.s32.totalorder %s32, 2
      %s34 = scalar_select %p33, 0, %s32
      %s35 = sadd.s32 1, %s26
      %s36 = scalar_select %p33, %s35, %s26
      %p37 = scmp.ge.s32.totalorder %s36, 2
      %s38 = scalar_select %p37, 0, %s36
      %s39 = ssub.s32 %s26, %s38
      %p40 = scmp.eq.s32.totalorder %s39, 0
      %s42 = sadd.s32 %s41, 1
      %s43 = scalar_select %p40, %s41, %s42
      %p46 = pneg %p40
      %p47 = scmp.eq.s32.totalorder %s19, 3
      %p48 = por %p46, %p47
      %p49 = scmp.ne.s32.totalorder %s41, %s44
      %p50 = scmp.eq.s32.totalorder %s19, 0
      %p51 = por %p49, %p50
      %p52 = scmp.ne.s32.totalorder %s41, %s44
      %p53 = scmp.eq.s32.totalorder %s24, 3
      %p54 = por %p52, %p53
      %p55 = scmp.ne.s32.totalorder %s44, %s45
      %p56 = scmp.eq.s32.totalorder %s24, 0
      %p57 = por %p55, %p56
      %p58 = scmp.ne.s32.totalorder %s44, %s45
      %p59 = scmp.eq.s32.totalorder %s25, 3
      %p60 = por %p58, %p59
      %p62 = scmp.ne.s32.totalorder %s45, %s61
      %p63 = scmp.eq.s32.totalorder %s25, 0
      %p64 = por %p62, %p63
      %s66 = sadd.s32 %s65, 1
      %p69 = scmp.eq.s32.totalorder %s19, 3
      %p70 = scmp.ne.s32.totalorder %s65, %s67
      %p71 = scmp.eq.s32.totalorder %s19, 0
      %p72 = por %p70, %p71
      %p73 = scmp.ne.s32.totalorder %s65, %s67
      %p74 = scmp.eq.s32.totalorder %s24, 3
      %p75 = por %p73, %p74
      %p76 = scmp.ne.s32.totalorder %s67, %s68
      %p77 = scmp.eq.s32.totalorder %s24, 0
      %p78 = por %p76, %p77
      %p79 = scmp.ne.s32.totalorder %s67, %s68
      %p80 = scmp.eq.s32.totalorder %s25, 3
      %p81 = por %p79, %p80
      %p83 = scmp.ne.s32.totalorder %s68, %s82
      %p84 = scmp.eq.s32.totalorder %s25, 0
      %p85 = por %p83, %p84
      %s87 = sadd.s32 %s86, 1
      %p90 = scmp.eq.s32.totalorder %s19, 3
      %p91 = scmp.ne.s32.totalorder %s86, %s88
      %p92 = scmp.eq.s32.totalorder %s19, 0
      %p93 = por %p91, %p92
      %p94 = scmp.ne.s32.totalorder %s86, %s88
      %p95 = scmp.eq.s32.totalorder %s24, 3
      %p96 = por %p94, %p95
      %p97 = scmp.ne.s32.totalorder %s88, %s89
      %p98 = scmp.eq.s32.totalorder %s24, 0
      %p99 = por %p97, %p98
      %p100 = scmp.ne.s32.totalorder %s88, %s89
      %p101 = scmp.eq.s32.totalorder %s25, 3
      %p102 = por %p100, %p101
      %p104 = scmp.ne.s32.totalorder %s89, %s103
      %p105 = scmp.eq.s32.totalorder %s25, 0
      %p106 = por %p104, %p105
      %s108 = sadd.s32 %s107, 1
      %p111 = scmp.eq.s32.totalorder %s19, 3
      %p112 = scmp.ne.s32.totalorder %s107, %s109
      %p113 = scmp.eq.s32.totalorder %s19, 0
      %p114 = por %p112, %p113
      %p115 = scmp.ne.s32.totalorder %s107, %s109
      %p116 = scmp.eq.s32.totalorder %s24, 3
      %p117 = por %p115, %p116
      %p118 = scmp.ne.s32.totalorder %s109, %s110
      %p119 = scmp.eq.s32.totalorder %s24, 0
      %p120 = por %p118, %p119
      %p121 = scmp.ne.s32.totalorder %s109, %s110
      %p122 = scmp.eq.s32.totalorder %s25, 3
      %p123 = por %p121, %p122
      %p125 = scmp.ne.s32.totalorder %s110, %s124
      %p126 = scmp.eq.s32.totalorder %s25, 0
      %p127 = por %p125, %p126
      %s128 = ssub.s32 %s27, %s34
      %p129 = scmp.eq.s32.totalorder %s128, 0
      %s131 = sadd.s32 %s130, 1
      %s132 = scalar_select %p129, %s130, %s131
      %p135 = pneg %p129
      %p136 = scmp.eq.s32.totalorder %s19, 3
      %p137 = por %p135, %p136
      %p138 = scmp.ne.s32.totalorder %s130, %s133
      %p139 = scmp.eq.s32.totalorder %s19, 0
      %p140 = por %p138, %p139
      %p141 = scmp.ne.s32.totalorder %s130, %s133
      %p142 = scmp.eq.s32.totalorder %s24, 3
      %p143 = por %p141, %p142
      %p144 = scmp.ne.s32.totalorder %s133, %s134
      %p145 = scmp.eq.s32.totalorder %s24, 0
      %p146 = por %p144, %p145
      %p147 = scmp.ne.s32.totalorder %s133, %s134
      %p148 = scmp.eq.s32.totalorder %s25, 3
      %p149 = por %p147, %p148
      %p151 = scmp.ne.s32.totalorder %s134, %s150
      %p152 = scmp.eq.s32.totalorder %s25, 0
      %p153 = por %p151, %p152
      %s154 = ssub.s32 %s27, %s34
      %p155 = scmp.eq.s32.totalorder %s154, 0
      %s157 = sadd.s32 %s156, 1
      %s158 = scalar_select %p155, %s156, %s157
      %p161 = pneg %p155
      %p162 = scmp.eq.s32.totalorder %s19, 3
      %p163 = por %p161, %p162
      %p164 = scmp.ne.s32.totalorder %s156, %s159
      %p165 = scmp.eq.s32.totalorder %s19, 0
      %p166 = por %p164, %p165
      %p167 = scmp.ne.s32.totalorder %s156, %s159
      %p168 = scmp.eq.s32.totalorder %s24, 3
      %p169 = por %p167, %p168
      %p170 = scmp.ne.s32.totalorder %s159, %s160
      %p171 = scmp.eq.s32.totalorder %s24, 0
      %p172 = por %p170, %p171
      %p173 = scmp.ne.s32.totalorder %s159, %s160
      %p174 = scmp.eq.s32.totalorder %s25, 3
      %p175 = por %p173, %p174
      %p177 = scmp.ne.s32.totalorder %s160, %s176
      %p178 = scmp.eq.s32.totalorder %s25, 0
      %p179 = por %p177, %p178
      %s180 = ssub.s32 %s26, %s38
      %p181 = scmp.eq.s32.totalorder %s180, 0
      %s183 = sadd.s32 %s182, 1
      %s184 = scalar_select %p181, %s182, %s183
      %p187 = pneg %p181
      %p188 = scmp.eq.s32.totalorder %s19, 3
      %p189 = por %p187, %p188
      %p190 = scmp.ne.s32.totalorder %s182, %s185
      %p191 = scmp.eq.s32.totalorder %s19, 0
      %p192 = por %p190, %p191
      %p193 = scmp.ne.s32.totalorder %s182, %s185
      %p194 = scmp.eq.s32.totalorder %s24, 3
      %p195 = por %p193, %p194
      %p196 = scmp.ne.s32.totalorder %s185, %s186
      %p197 = scmp.eq.s32.totalorder %s24, 0
      %p198 = por %p196, %p197
      %p199 = scmp.ne.s32.totalorder %s185, %s186
      %p200 = scmp.eq.s32.totalorder %s25, 3
      %p201 = por %p199, %p200
      %p203 = scmp.ne.s32.totalorder %s186, %s202
      %p204 = scmp.eq.s32.totalorder %s25, 0
      %p205 = por %p203, %p204
      %p206 = scmp.le.s32.totalorder 1, %s19
      %p207 = scmp.lt.s32.totalorder %s19, 5
      %p208 = pnand %p206, %p207
      %p209 = pneg %p208
      // Predicated region
      $region9: #{block_forward.1} parent=5 // pred_check
        _
      $region10: #{block_forward.1} parent=5 // pred_check_branch
        %211 = sbr.rel (%p208) target = $region12
      $region11: #{block_forward.1} parent=5 // pred_region
        %s212 = ssub.s32 %s19, 1
        // Predicated region
        $region13: #{block_forward.1} parent=11 // pred_check
          %p213 = pneg %p78
        $region14: #{block_forward.1} parent=11 // pred_check_branch
          %215 = sbr.rel (%p213) target = $region16
        $region15: #{block_forward.1} parent=11 // pred_region
          _
        $region16: #{block_forward.1} parent=11 // pred_fallthru
          _
        // Predicated region
        $region17: #{block_forward.1} parent=11 // pred_check
          %p216 = pneg %p99
        $region18: #{block_forward.1} parent=11 // pred_check_branch
          %218 = sbr.rel (%p216) target = $region20
        $region19: #{block_forward.1} parent=11 // pred_region
          %s220 = ssub.s32 2048, 2048
          %221 = vsyncadd [#allocation8], %s220
          %s222 = sshll.u32 [#allocation7], 4
          %s223 = int_to_ptr.vmem [resolvable:$true] %s222
          %228 = dma.hbm_to_vmem [thread:$0]  %s2, 2048, %s223, [#allocation8], 128, 128, 8
        $region20: #{block_forward.1} parent=11 // pred_fallthru
          _
        // Predicated region
        $region21: #{block_forward.1} parent=11 // pred_check
          %p229 = pneg %p120
        $region22: #{block_forward.1} parent=11 // pred_check_branch
          %231 = sbr.rel (%p229) target = $region24
        $region23: #{block_forward.1} parent=11 // pred_region
          _
        $region24: #{block_forward.1} parent=11 // pred_fallthru
          _
      $region12: #{block_forward.1} parent=5 // pred_fallthru
        _
      %p232 = scmp.lt.s32.totalorder %s19, 4
      // Predicated region
      $region25: #{block_forward.1} parent=5 // pred_check
        %p233 = pneg %p232
      $region26: #{block_forward.1} parent=5 // pred_check_branch
        %235 = sbr.rel (%p233) target = $region28
      $region27: #{block_forward.1} parent=5 // pred_region
        // Predicated region
        $region29: #{block_forward.1} parent=27 // pred_check
          %p236 = pneg %p51
        $region30: #{block_forward.1} parent=27 // pred_check_branch
          %238 = sbr.rel (%p236) target = $region32
        $region31: #{block_forward.1} parent=27 // pred_region
          %s239 = sand.u32 %s19, 1
          %s240 = scalar_lea.sflag [#allocation5], %s239
          %s241 = sand.u32 %s41, 1
          %s242 = smul.addr %s241, 8
          %s243 = scalar_lea.vmem [#allocation4], %s242
          %s245 = ssub.s32 128, 128
          %246 = vsyncadd %s240, %s245
          %s247 = smul.addr %s26, 128
          %s248 = scalar_lea.hbm %s0, %s247
          %s250 = sshll.u32 %s243, 4
          %s251 = int_to_ptr.vmem [resolvable:$true] %s250
          %253 = dma.hbm_to_vmem [thread:$0]  %s248, 128, %s251, %s240
        $region32: #{block_forward.1} parent=27 // pred_fallthru
          _
        // Predicated region
        $region33: #{block_forward.1} parent=27 // pred_check
          %p254 = pneg %p140
        $region34: #{block_forward.1} parent=27 // pred_check_branch
          %256 = sbr.rel (%p254) target = $region36
        $region35: #{block_forward.1} parent=27 // pred_region
          %s257 = sand.u32 %s19, 1
          %s258 = scalar_lea.sflag [#allocation5], %s257
          %s259 = sand.u32 %s130, 1
          %s260 = smul.addr %s259, 256
          %s261 = scalar_lea.vmem [#allocation9], %s260
          %s263 = ssub.s32 4096, 4096
          %264 = vsyncadd %s258, %s263
          %s265 = smul.addr %s27, 32
          %s266 = smul.addr %s265, 128
          %s267 = scalar_lea.hbm %s4, %s266
          %s268 = sshll.u32 %s261, 4
          %s269 = int_to_ptr.vmem [resolvable:$true] %s268
          %274 = dma.hbm_to_vmem [thread:$0]  %s267, 4096, %s269, %s258, 256, 256, 16
        $region36: #{block_forward.1} parent=27 // pred_fallthru
          _
        // Predicated region
        $region37: #{block_forward.1} parent=27 // pred_check
          %p275 = pneg %p166
        $region38: #{block_forward.1} parent=27 // pred_check_branch
          %277 = sbr.rel (%p275) target = $region40
        $region39: #{block_forward.1} parent=27 // pred_region
          %s278 = sand.u32 %s19, 1
          %s279 = scalar_lea.sflag [#allocation5], %s278
          %s280 = sand.u32 %s156, 1
          %s281 = smul.addr %s280, 128
          %s282 = scalar_lea.vmem [#allocation10], %s281
          %s284 = ssub.s32 2048, 2048
          %285 = vsyncadd %s279, %s284
          %s286 = smul.addr %s27, 16
          %s287 = smul.addr %s286, 128
          %s288 = scalar_lea.hbm %s5, %s287
          %s289 = sshll.u32 %s282, 4
          %s290 = int_to_ptr.vmem [resolvable:$true] %s289
          %295 = dma.hbm_to_vmem [thread:$0]  %s288, 2048, %s290, %s279, 128, 128, 8
        $region40: #{block_forward.1} parent=27 // pred_fallthru
          _
      $region28: #{block_forward.1} parent=5 // pred_fallthru
        _
      %p296 = scmp.le.s32.totalorder 1, %s19
      %p297 = scmp.lt.s32.totalorder %s19, 5
      %p298 = pnand %p296, %p297
      %p299 = pneg %p298
      // Predicated region
      $region41: #{block_forward.1} parent=5 // pred_check
        _
      $region42: #{block_forward.1} parent=5 // pred_check_branch
        %301 = sbr.rel (%p298) target = $region44
      $region43: #{block_forward.1} parent=5 // pred_region
        %s302 = ssub.s32 %s19, 1
        %s303 = sand.u32 %s24, 1
        %s304 = scalar_lea.sflag [#allocation5], %s303
        %s305 = sand.u32 %s44, 1
        %s306 = smul.addr %s305, 8
        %s307 = scalar_lea.vmem [#allocation4], %s306
        // Predicated region
        $region45: #{block_forward.1} parent=43 // pred_check
          %p308 = pneg %p57
        $region46: #{block_forward.1} parent=43 // pred_check_branch
          %310 = sbr.rel (%p308) target = $region48
        $region47: #{block_forward.1} parent=43 // pred_region
          %311 = dma.done %s304, 128
        $region48: #{block_forward.1} parent=43 // pred_fallthru
          _
        // Predicated region
        $region49: #{block_forward.1} parent=43 // pred_check
          %p312 = pneg %p99
        $region50: #{block_forward.1} parent=43 // pred_check_branch
          %314 = sbr.rel (%p312) target = $region52
        $region51: #{block_forward.1} parent=43 // pred_region
          %315 = dma.done [#allocation8], 2048
        $region52: #{block_forward.1} parent=43 // pred_fallthru
          _
        %s316 = sand.u32 %s24, 1
        %s317 = scalar_lea.sflag [#allocation5], %s316
        %s318 = sand.u32 %s133, 1
        %s319 = smul.addr %s318, 256
        %s320 = scalar_lea.vmem [#allocation9], %s319
        // Predicated region
        $region53: #{block_forward.1} parent=43 // pred_check
          %p321 = pneg %p146
        $region54: #{block_forward.1} parent=43 // pred_check_branch
          %323 = sbr.rel (%p321) target = $region56
        $region55: #{block_forward.1} parent=43 // pred_region
          %324 = dma.done %s317, 4096
        $region56: #{block_forward.1} parent=43 // pred_fallthru
          _
        %s325 = sand.u32 %s24, 1
        %s326 = scalar_lea.sflag [#allocation5], %s325
        %s327 = sand.u32 %s159, 1
        %s328 = smul.addr %s327, 128
        %s329 = scalar_lea.vmem [#allocation10], %s328
        // Predicated region
        $region57: #{block_forward.1} parent=43 // pred_check
          %p330 = pneg %p172
        $region58: #{block_forward.1} parent=43 // pred_check_branch
          %332 = sbr.rel (%p330) target = $region60
        $region59: #{block_forward.1} parent=43 // pred_region
          %333 = dma.done %s326, 2048
        $region60: #{block_forward.1} parent=43 // pred_fallthru
          _
        %s334 = sand.u32 %s24, 1
        %s335 = scalar_lea.sflag [#allocation5], %s334
        %s336 = sand.u32 %s44, 1
        %s337 = smul.addr %s336, 8
        %s338 = scalar_lea.vmem [#allocation4], %s337
        %p339 = pneg %p57
        %p340 = pneg %p54
        %p341 = pneg %p78
        %p342 = pneg %p75
        %p343 = pneg %p99
        %p344 = pneg %p96
        %p345 = pneg %p120
        %p346 = pneg %p117
        %s347 = sand.u32 %s24, 1
        %s348 = scalar_lea.sflag [#allocation5], %s347
        %s349 = sand.u32 %s133, 1
        %s350 = smul.addr %s349, 256
        %s351 = scalar_lea.vmem [#allocation9], %s350
        %p352 = pneg %p146
        %p353 = pneg %p143
        %s354 = sand.u32 %s24, 1
        %s355 = scalar_lea.sflag [#allocation5], %s354
        %s356 = sand.u32 %s159, 1
        %s357 = smul.addr %s356, 128
        %s358 = scalar_lea.vmem [#allocation10], %s357
        %p359 = pneg %p172
        %p360 = pneg %p169
        %p361 = pneg %p198
        %p362 = pneg %p195
        %s363 = sand.u32 %s185, 1
        %s364 = scalar_lea.sflag [#allocation6], %s363
        %s365 = sand.u32 %s185, 1
        %s366 = smul.addr %s365, 8
        %s367 = scalar_lea.vmem [#allocation11], %s366
        %p368 = scmp.eq.s32.totalorder %s29, 0
        // Predicated region
        $region61: #{block_forward.1} parent=43 // pred_check
          %p369 = pneg %p368
        $region62: #{block_forward.1} parent=43 // pred_check_branch
          %371 = sbr.rel (%p369) target = $region64
        $region63: #{block_forward.1} parent=43 // pred_region
          %v372 = vld [vmem:[%s307] sm:$0xff]
          %v373 = vld [vmem:[%s1] sm:$0x1]
          %v374 = vmul.f32 %v372, %v372
          %375 = vadd.xlane.f32.xlu0 %v374
          %v376 = vpop.xlane.xlu0 %375
          %v377 = vrcp.pop 128.0
          %v378 = vmul.f32 %v376, %v377
          %v379 = vadd.f32 %v378, 1e-05
          %v380 = vrsqrt.pop %v379
          %v381 = vmul.f32 %v372, %v380
          %v383 = vlaneseq
          %v384 = vshrl.u32 %v383, 7
          %v385 = vsub.s32 0, %v384
          %v386 = vrot.slane %v373, %v385
          %v388 = vmul.f32 %v386, %v381
          %v389 = vld [vmem:[#allocation7] sm:$0xff]
          %v390 = vld [vmem:[#allocation7 + $0x8] sm:$0xff]
          %v391 = vld [vmem:[#allocation7 + $0x10] sm:$0xff]
          %v392 = vld [vmem:[#allocation7 + $0x18] sm:$0xff]
          %v393 = vld [vmem:[#allocation7 + $0x20] sm:$0xff]
          %v394 = vld [vmem:[#allocation7 + $0x28] sm:$0xff]
          %v395 = vld [vmem:[#allocation7 + $0x30] sm:$0xff]
          %v396 = vld [vmem:[#allocation7 + $0x38] sm:$0xff]
          %v397 = vld [vmem:[#allocation7 + $0x40] sm:$0xff]
          %v398 = vld [vmem:[#allocation7 + $0x48] sm:$0xff]
          %v399 = vld [vmem:[#allocation7 + $0x50] sm:$0xff]
          %v400 = vld [vmem:[#allocation7 + $0x58] sm:$0xff]
          %v401 = vld [vmem:[#allocation7 + $0x60] sm:$0xff]
          %v402 = vld [vmem:[#allocation7 + $0x68] sm:$0xff]
          %v403 = vld [vmem:[#allocation7 + $0x70] sm:$0xff]
          %v404 = vld [vmem:[#allocation7 + $0x78] sm:$0xff]
          %405 = vmatprep.subr.mxu0 0.0
          %406 = vmatpush1.msra.mxu0 %v389
          %407 = vmatprep.subr.mxu0 0.0
          %408 = vmatpush1.msra.mxu0 %v390
          %409 = vmatprep.subr.mxu0 0.0
          %410 = vmatpush1.msra.mxu0 %v391
          %411 = vmatprep.subr.mxu0 0.0
          %412 = vmatpush1.msra.mxu0 %v392
          %413 = vmatprep.subr.mxu0 0.0
          %414 = vmatpush1.msra.mxu0 %v393
          %415 = vmatprep.subr.mxu0 0.0
          %416 = vmatpush1.msra.mxu0 %v394
          %417 = vmatprep.subr.mxu0 0.0
          %418 = vmatpush1.msra.mxu0 %v395
          %419 = vmatprep.subr.mxu0 0.0
          %420 = vmatpush1.msra.mxu0 %v396
          %421 = vmatprep.subr.mxu0 0.0
          %422 = vmatpush1.msra.mxu0 %v397
          %423 = vmatprep.subr.mxu0 0.0
          %424 = vmatpush1.msra.mxu0 %v398
          %425 = vmatprep.subr.mxu0 0.0
          %426 = vmatpush1.msra.mxu0 %v399
          %427 = vmatprep.subr.mxu0 0.0
          %428 = vmatpush1.msra.mxu0 %v400
          %429 = vmatprep.subr.mxu0 0.0
          %430 = vmatpush1.msra.mxu0 %v401
          %431 = vmatprep.subr.mxu0 0.0
          %432 = vmatpush1.msra.mxu0 %v402
          %433 = vmatprep.subr.mxu0 0.0
          %434 = vmatpush1.msra.mxu0 %v403
          %435 = vmatprep.subr.mxu0 0.0
          %436 = vmatpush1.msra.mxu0 %v404
          %437 = vmatprep.subr.mxu0 0.0
          %438 = vmatpush1.msra.mxu0 0.0
          %439 = vmatprep.subr.mxu0 0.0
          %440 = vmatpush1.msra.mxu0 0.0
          %441 = vmatprep.subr.mxu0 0.0
          %442 = vmatpush1.msra.mxu0 0.0
          %443 = vmatprep.subr.mxu0 0.0
          %444 = vmatpush1.msra.mxu0 0.0
          %445 = vmatprep.subr.mxu0 0.0
          %446 = vmatpush1.msra.mxu0 0.0
          %447 = vmatprep.subr.mxu0 0.0
          %448 = vmatpush1.msra.mxu0 0.0
          %449 = vmatprep.subr.mxu0 0.0
          %450 = vmatpush1.msra.mxu0 0.0
          %451 = vmatprep.subr.mxu0 0.0
          %452 = vmatpush1.msra.mxu0 0.0
          %453 = vmatprep.subr.mxu0 0.0
          %454 = vmatpush1.msra.mxu0 0.0
          %455 = vmatprep.subr.mxu0 0.0
          %456 = vmatpush1.msra.mxu0 0.0
          %457 = vmatprep.subr.mxu0 0.0
          %458 = vmatpush1.msra.mxu0 0.0
          %459 = vmatprep.subr.mxu0 0.0
          %460 = vmatpush1.msra.mxu0 0.0
          %461 = vmatprep.subr.mxu0 0.0
          %462 = vmatpush1.msra.mxu0 0.0
          %463 = vmatprep.subr.mxu0 0.0
          %464 = vmatpush1.msra.mxu0 0.0
          %465 = vmatprep.subr.mxu0 0.0
          %466 = vmatpush1.msra.mxu0 0.0
          %467 = vmatprep.subr.mxu0 0.0
          %468 = vmatpush1.msra.mxu0 0.0
          %469 = vmatprep.mubr.f32.mxu0 0.0
          %470 = vmatmul.mubr.f32.gmra.mrb[0].mxu0 %v388
          %v471 = vpop.f32.mrb[0].mxu0
          %v472 = vadd.f32 %v372, %v471
          %v473 = vpop.f32.mrb[0].mxu0
          %474 = vdwg.mxu0
          %475 = vst [vmem:[#allocation3] sm:$0xff] %v472
          %v476 = vld [vmem:[%s3] sm:$0x1]
          %v477 = vmul.f32 %v472, %v472
          %478 = vadd.xlane.f32.xlu0 %v477
          %v479 = vpop.xlane.xlu0 %478
          %v480 = vmul.f32 %v479, %v377
          %v481 = vadd.f32 %v480, 1e-05
          %v482 = vrsqrt.pop %v481
          %v483 = vmul.f32 %v472, %v482
          %v485 = vlaneseq
          %v486 = vshrl.u32 %v485, 7
          %v487 = vsub.s32 0, %v486
          %v488 = vrot.slane %v476, %v487
          %v490 = vmul.f32 %v488, %v483
          %491 = vst [vmem:[#allocation2] sm:$0xff] %v490
        $region64: #{block_forward.1} parent=43 // pred_fallthru
          _
        %v492 = vld [vmem:[#allocation2] sm:$0xff]
        %v493 = vld [vmem:[%s320] sm:$0xff]
        %v494 = vld [vmem:[%s320 + $0x8] sm:$0xff]
        %v495 = vld [vmem:[%s320 + $0x10] sm:$0xff]
        %v496 = vld [vmem:[%s320 + $0x18] sm:$0xff]
        %v497 = vld [vmem:[%s320 + $0x20] sm:$0xff]
        %v498 = vld [vmem:[%s320 + $0x28] sm:$0xff]
        %v499 = vld [vmem:[%s320 + $0x30] sm:$0xff]
        %v500 = vld [vmem:[%s320 + $0x38] sm:$0xff]
        %v501 = vld [vmem:[%s320 + $0x40] sm:$0xff]
        %v502 = vld [vmem:[%s320 + $0x48] sm:$0xff]
        %v503 = vld [vmem:[%s320 + $0x50] sm:$0xff]
        %v504 = vld [vmem:[%s320 + $0x58] sm:$0xff]
        %v505 = vld [vmem:[%s320 + $0x60] sm:$0xff]
        %v506 = vld [vmem:[%s320 + $0x68] sm:$0xff]
        %v507 = vld [vmem:[%s320 + $0x70] sm:$0xff]
        %v508 = vld [vmem:[%s320 + $0x78] sm:$0xff]
        %v509 = vld [vmem:[%s320 + $0x80] sm:$0xff]
        %v510 = vld [vmem:[%s320 + $0x88] sm:$0xff]
        %v511 = vld [vmem:[%s320 + $0x90] sm:$0xff]
        %v512 = vld [vmem:[%s320 + $0x98] sm:$0xff]
        %v513 = vld [vmem:[%s320 + $0xa0] sm:$0xff]
        %v514 = vld [vmem:[%s320 + $0xa8] sm:$0xff]
        %v515 = vld [vmem:[%s320 + $0xb0] sm:$0xff]
        %v516 = vld [vmem:[%s320 + $0xb8] sm:$0xff]
        %v517 = vld [vmem:[%s320 + $0xc0] sm:$0xff]
        %v518 = vld [vmem:[%s320 + $0xc8] sm:$0xff]
        %v519 = vld [vmem:[%s320 + $0xd0] sm:$0xff]
        %v520 = vld [vmem:[%s320 + $0xd8] sm:$0xff]
        %v521 = vld [vmem:[%s320 + $0xe0] sm:$0xff]
        %v522 = vld [vmem:[%s320 + $0xe8] sm:$0xff]
        %v523 = vld [vmem:[%s320 + $0xf0] sm:$0xff]
        %v524 = vld [vmem:[%s320 + $0xf8] sm:$0xff]
        %525 = vmatprep.subr.mxu0 %v494
        %526 = vmatpush1.msra.mxu0 %v493
        %527 = vmatprep.subr.mxu0 %v496
        %528 = vmatpush1.msra.mxu0 %v495
        %529 = vmatprep.subr.mxu0 %v498
        %530 = vmatpush1.msra.mxu0 %v497
        %531 = vmatprep.subr.mxu0 %v500
        %532 = vmatpush1.msra.mxu0 %v499
        %533 = vmatprep.subr.mxu0 %v502
        %534 = vmatpush1.msra.mxu0 %v501
        %535 = vmatprep.subr.mxu0 %v504
        %536 = vmatpush1.msra.mxu0 %v503
        %537 = vmatprep.subr.mxu0 %v506
        %538 = vmatpush1.msra.mxu0 %v505
        %539 = vmatprep.subr.mxu0 %v508
        %540 = vmatpush1.msra.mxu0 %v507
        %541 = vmatprep.subr.mxu0 %v510
        %542 = vmatpush1.msra.mxu0 %v509
        %543 = vmatprep.subr.mxu0 %v512
        %544 = vmatpush1.msra.mxu0 %v511
        %545 = vmatprep.subr.mxu0 %v514
        %546 = vmatpush1.msra.mxu0 %v513
        %547 = vmatprep.subr.mxu0 %v516
        %548 = vmatpush1.msra.mxu0 %v515
        %549 = vmatprep.subr.mxu0 %v518
        %550 = vmatpush1.msra.mxu0 %v517
        %551 = vmatprep.subr.mxu0 %v520
        %552 = vmatpush1.msra.mxu0 %v519
        %553 = vmatprep.subr.mxu0 %v522
        %554 = vmatpush1.msra.mxu0 %v521
        %555 = vmatprep.subr.mxu0 %v524
        %556 = vmatpush1.msra.mxu0 %v523
        %557 = vmatprep.subr.mxu0 0.0
        %558 = vmatpush1.msra.mxu0 0.0
        %559 = vmatprep.subr.mxu0 0.0
        %560 = vmatpush1.msra.mxu0 0.0
        %561 = vmatprep.subr.mxu0 0.0
        %562 = vmatpush1.msra.mxu0 0.0
        %563 = vmatprep.subr.mxu0 0.0
        %564 = vmatpush1.msra.mxu0 0.0
        %565 = vmatprep.subr.mxu0 0.0
        %566 = vmatpush1.msra.mxu0 0.0
        %567 = vmatprep.subr.mxu0 0.0
        %568 = vmatpush1.msra.mxu0 0.0
        %569 = vmatprep.subr.mxu0 0.0
        %570 = vmatpush1.msra.mxu0 0.0
        %571 = vmatprep.subr.mxu0 0.0
        %572 = vmatpush1.msra.mxu0 0.0
        %573 = vmatprep.subr.mxu0 0.0
        %574 = vmatpush1.msra.mxu0 0.0
        %575 = vmatprep.subr.mxu0 0.0
        %576 = vmatpush1.msra.mxu0 0.0
        %577 = vmatprep.subr.mxu0 0.0
        %578 = vmatpush1.msra.mxu0 0.0
        %579 = vmatprep.subr.mxu0 0.0
        %580 = vmatpush1.msra.mxu0 0.0
        %581 = vmatprep.subr.mxu0 0.0
        %582 = vmatpush1.msra.mxu0 0.0
        %583 = vmatprep.subr.mxu0 0.0
        %584 = vmatpush1.msra.mxu0 0.0
        %585 = vmatprep.subr.mxu0 0.0
        %586 = vmatpush1.msra.mxu0 0.0
        %587 = vmatprep.subr.mxu0 0.0
        %588 = vmatpush1.msra.mxu0 0.0
        %589 = vmatprep.mubr.f32.mxu0 0.0
        %590 = vmatmul.mubr.f32.gmra.mrb[0].mxu0 %v492
        %v591 = vpop.f32.mrb[0].mxu0
        %v592 = vadd.f32 0.0, %v591
        %v593 = vpop.f32.mrb[0].mxu0
        %v594 = vadd.f32 0.0, %v593
        %595 = vdwg.mxu0
        %v596 = vxor.u32 %v592, 2147483648
        %v597 = vmul.f32 %v596, 1.442695
        %v598 = vpow.pop %v597
        %v599 = vadd.f32 %v598, 1.0
        %v600 = vrcp.pop %v599
        %v601 = vmul.f32 1.0, %v600
        %v602 = vmul.f32 %v592, %v601
        %v603 = vmul.f32 %v602, %v594
        %v604 = vld [vmem:[#allocation3] sm:$0xff]
        %v605 = vld [vmem:[%s329] sm:$0xff]
        %v606 = vld [vmem:[%s329 + $0x8] sm:$0xff]
        %v607 = vld [vmem:[%s329 + $0x10] sm:$0xff]
        %v608 = vld [vmem:[%s329 + $0x18] sm:$0xff]
        %v609 = vld [vmem:[%s329 + $0x20] sm:$0xff]
        %v610 = vld [vmem:[%s329 + $0x28] sm:$0xff]
        %v611 = vld [vmem:[%s329 + $0x30] sm:$0xff]
        %v612 = vld [vmem:[%s329 + $0x38] sm:$0xff]
        %v613 = vld [vmem:[%s329 + $0x40] sm:$0xff]
        %v614 = vld [vmem:[%s329 + $0x48] sm:$0xff]
        %v615 = vld [vmem:[%s329 + $0x50] sm:$0xff]
        %v616 = vld [vmem:[%s329 + $0x58] sm:$0xff]
        %v617 = vld [vmem:[%s329 + $0x60] sm:$0xff]
        %v618 = vld [vmem:[%s329 + $0x68] sm:$0xff]
        %v619 = vld [vmem:[%s329 + $0x70] sm:$0xff]
        %v620 = vld [vmem:[%s329 + $0x78] sm:$0xff]
        %621 = vmatprep.subr.mxu0 0.0
        %622 = vmatpush1.msra.mxu0 %v605
        %623 = vmatprep.subr.mxu0 0.0
        %624 = vmatpush1.msra.mxu0 %v606
        %625 = vmatprep.subr.mxu0 0.0
        %626 = vmatpush1.msra.mxu0 %v607
        %627 = vmatprep.subr.mxu0 0.0
        %628 = vmatpush1.msra.mxu0 %v608
        %629 = vmatprep.subr.mxu0 0.0
        %630 = vmatpush1.msra.mxu0 %v609
        %631 = vmatprep.subr.mxu0 0.0
        %632 = vmatpush1.msra.mxu0 %v610
        %633 = vmatprep.subr.mxu0 0.0
        %634 = vmatpush1.msra.mxu0 %v611
        %635 = vmatprep.subr.mxu0 0.0
        %636 = vmatpush1.msra.mxu0 %v612
        %637 = vmatprep.subr.mxu0 0.0
        %638 = vmatpush1.msra.mxu0 %v613
        %639 = vmatprep.subr.mxu0 0.0
        %640 = vmatpush1.msra.mxu0 %v614
        %641 = vmatprep.subr.mxu0 0.0
        %642 = vmatpush1.msra.mxu0 %v615
        %643 = vmatprep.subr.mxu0 0.0
        %644 = vmatpush1.msra.mxu0 %v616
        %645 = vmatprep.subr.mxu0 0.0
        %646 = vmatpush1.msra.mxu0 %v617
        %647 = vmatprep.subr.mxu0 0.0
        %648 = vmatpush1.msra.mxu0 %v618
        %649 = vmatprep.subr.mxu0 0.0
        %650 = vmatpush1.msra.mxu0 %v619
        %651 = vmatprep.subr.mxu0 0.0
        %652 = vmatpush1.msra.mxu0 %v620
        %653 = vmatprep.subr.mxu0 0.0
        %654 = vmatpush1.msra.mxu0 0.0
        %655 = vmatprep.subr.mxu0 0.0
        %656 = vmatpush1.msra.mxu0 0.0
        %657 = vmatprep.subr.mxu0 0.0
        %658 = vmatpush1.msra.mxu0 0.0
        %659 = vmatprep.subr.mxu0 0.0
        %660 = vmatpush1.msra.mxu0 0.0
        %661 = vmatprep.subr.mxu0 0.0
        %662 = vmatpush1.msra.mxu0 0.0
        %663 = vmatprep.subr.mxu0 0.0
        %664 = vmatpush1.msra.mxu0 0.0
        %665 = vmatprep.subr.mxu0 0.0
        %666 = vmatpush1.msra.mxu0 0.0
        %667 = vmatprep.subr.mxu0 0.0
        %668 = vmatpush1.msra.mxu0 0.0
        %669 = vmatprep.subr.mxu0 0.0
        %670 = vmatpush1.msra.mxu0 0.0
        %671 = vmatprep.subr.mxu0 0.0
        %672 = vmatpush1.msra.mxu0 0.0
        %673 = vmatprep.subr.mxu0 0.0
        %674 = vmatpush1.msra.mxu0 0.0
        %675 = vmatprep.subr.mxu0 0.0
        %676 = vmatpush1.msra.mxu0 0.0
        %677 = vmatprep.subr.mxu0 0.0
        %678 = vmatpush1.msra.mxu0 0.0
        %679 = vmatprep.subr.mxu0 0.0
        %680 = vmatpush1.msra.mxu0 0.0
        %681 = vmatprep.subr.mxu0 0.0
        %682 = vmatpush1.msra.mxu0 0.0
        %683 = vmatprep.subr.mxu0 0.0
        %684 = vmatpush1.msra.mxu0 0.0
        %685 = vmatprep.mubr.f32.mxu0 0.0
        %686 = vmatmul.mubr.f32.gmra.mrb[0].mxu0 %v603
        %v687 = vpop.f32.mrb[0].mxu0
        %v688 = vadd.f32 0.0, %v687
        %v689 = vpop.f32.mrb[0].mxu0
        %690 = vdwg.mxu0
        %v691 = vadd.f32 %v604, %v688
        %692 = vst [vmem:[#allocation3] sm:$0xff] %v691
        %p693 = scmp.eq.s32.totalorder %s29, 1
        // Predicated region
        $region65: #{block_forward.1} parent=43 // pred_check
          %p694 = pneg %p693
        $region66: #{block_forward.1} parent=43 // pred_check_branch
          %696 = sbr.rel (%p694) target = $region68
        $region67: #{block_forward.1} parent=43 // pred_region
          %v697 = vld [vmem:[#allocation3] sm:$0xff]
          %698 = vst [vmem:[%s367] sm:$0xff] %v697
        $region68: #{block_forward.1} parent=43 // pred_fallthru
          _
        %s699 = sand.u32 %s185, 1
        %s700 = scalar_lea.sflag [#allocation6], %s699
        %s701 = sand.u32 %s185, 1
        %s702 = smul.addr %s701, 8
        %s703 = scalar_lea.vmem [#allocation11], %s702
        // Predicated region
        $region69: #{block_forward.1} parent=43 // pred_check
          %p704 = pneg %p195
        $region70: #{block_forward.1} parent=43 // pred_check_branch
          %706 = sbr.rel (%p704) target = $region72
        $region71: #{block_forward.1} parent=43 // pred_region
          %s708 = ssub.s32 128, 128
          %709 = vsyncadd %s700, %s708
          %s710 = smul.addr %s28, 128
          %s711 = scalar_lea.hbm %s6, %s710
          %s713 = sshll.u32 %s703, 4
          %s714 = int_to_ptr.vmem [resolvable:$true] %s713
          %716 = dma.vmem_to_hbm [thread:$0]  %s714, 128, %s711, %s700
        $region72: #{block_forward.1} parent=43 // pred_fallthru
          _
      $region44: #{block_forward.1} parent=5 // pred_fallthru
        _
      %p717 = scmp.le.s32.totalorder 2, %s19
      // Predicated region
      $region73: #{block_forward.1} parent=5 // pred_check
        %p718 = pneg %p717
      $region74: #{block_forward.1} parent=5 // pred_check_branch
        %720 = sbr.rel (%p718) target = $region76
      $region75: #{block_forward.1} parent=5 // pred_region
        %s721 = ssub.s32 %s19, 2
        // Predicated region
        $region77: #{block_forward.1} parent=75 // pred_check
          %p722 = pneg %p201
        $region78: #{block_forward.1} parent=75 // pred_check_branch
          %724 = sbr.rel (%p722) target = $region80
        $region79: #{block_forward.1} parent=75 // pred_region
          %s725 = sand.u32 %s186, 1
          %s726 = scalar_lea.sflag [#allocation6], %s725
          %s727 = sand.u32 %s186, 1
          %s728 = smul.addr %s727, 8
          %s729 = scalar_lea.vmem [#allocation11], %s728
          %730 = dma.done %s726, 128
        $region80: #{block_forward.1} parent=75 // pred_fallthru
          _
      $region76: #{block_forward.1} parent=5 // pred_fallthru
        _
    $region6: #{block_forward.1} parent=1 // loop_footer
      %s23 = sadd.s32 1, %s19
    $region7: #{block_forward.1} parent=1 // loop_footer_branch
      %18 = sbr.rel target = $region3
    $region8: #{block_forward.1} parent=1 // loop_exit
      _
    %731 = vsyncpa [#allocation5], 1
    %s732 = scalar_lea.sflag [#allocation5], 1
    %733 = vsyncpa %s732, 1
    %734 = vsyncpa [#allocation8], 1
    %735 = vsyncpa [#allocation6], 1
    %s736 = scalar_lea.sflag [#allocation6], 1
    %737 = vsyncpa %s736, 1

</llo_original>
